<compile_context>
chip_gen: v5e
topology: v5e:2x2
jax: 0.10.0
libtpu: 0.0.40
codegen_flags: <defaults>
</compile_context>

<pallas_src>
import functools

import jax
import jax.numpy as jnp
from jax import lax
from jax.experimental import pallas as pl
from jax.experimental.pallas import tpu as pltpu


# ----------------------------------------------------------------------------
# Fused (bi)LSTM layer: one kernel per layer, whole sequence resident in VMEM.
# ----------------------------------------------------------------------------
def _lstm_layer_kernel(x2_ref, wih_ref, whh_ref, b_ref, out_ref, pre_ref, *,
                       seq_len, batch, hidden, num_dir, in_is_one):
    T, B, H = seq_len, batch, hidden

    # ---- prologue: input projection for all timesteps / both directions ----
    if in_is_one:
        # (T*B, 1) x (1, D*4H): contraction dim 1 -> outer product on the VPU.
        pre = x2_ref[...] * wih_ref[...] + b_ref[...]
    else:
        pre = (jnp.dot(x2_ref[...], wih_ref[...],
                       preferred_element_type=jnp.float32) + b_ref[...])
    pre_ref[...] = pre                                   # (T*B, D*4H) scratch

    # Loop-invariant recurrent weights, loaded once.
    whh = [whh_ref[d] for d in range(num_dir)]           # each (H, 4H)
    h = [jnp.zeros((B, H), jnp.float32) for _ in range(num_dir)]
    c = [jnp.zeros((B, H), jnp.float32) for _ in range(num_dir)]

    # ---- recurrence: fully unrolled, only h @ W_hh is sequential ----
    for s in range(T):
        for d in range(num_dir):
            t = s if d == 0 else T - 1 - s               # backward runs reversed
            p = pre_ref[pl.ds(t * B, B), pl.ds(d * 4 * H, 4 * H)]   # (B, 4H)
            gates = p + jnp.dot(h[d], whh[d], preferred_element_type=jnp.float32)
            # PyTorch gate order: i, f, g, o
            i = jax.nn.sigmoid(gates[:, 0:H])
            f = jax.nn.sigmoid(gates[:, H:2 * H])
            g = jnp.tanh(gates[:, 2 * H:3 * H])
            o = jax.nn.sigmoid(gates[:, 3 * H:4 * H])
            c[d] = f * c[d] + i * g
            h[d] = o * jnp.tanh(c[d])
            out_ref[t, :, pl.ds(d * H, H)] = h[d]


def lstm_layer(x, wih_cat, whh_stack, b_cat):
    """Fused (bi)directional LSTM layer.

    x: (T, B, In); wih_cat: (In, D*4H); whh_stack: (D, H, 4H); b_cat: (1, D*4H).
    Returns (T, B, D*H) with [fwd | bwd] feature layout (PyTorch order).
    """
    T, B, In = x.shape
    num_dir, H, _ = whh_stack.shape
    kernel = functools.partial(
        _lstm_layer_kernel, seq_len=T, batch=B, hidden=H,
        num_dir=num_dir, in_is_one=(In == 1))
    return pl.pallas_call(
        kernel,
        out_shape=jax.ShapeDtypeStruct((T, B, num_dir * H), jnp.float32),
        scratch_shapes=[pltpu.VMEM((T * B, num_dir * 4 * H), jnp.float32)],
    )(x.reshape(T * B, In), wih_cat, whh_stack, b_cat)


# ----------------------------------------------------------------------------
# Fused pooling (adaptive avg/max over the batch axis, output size 2) + MLP.
# ----------------------------------------------------------------------------
def _decoder_kernel(*refs, bins, relus):
    s_ref = refs[0]
    out_ref = refs[-1]
    wb_refs = refs[1:-1]

    s = s_ref[...]                                  # (T, B, DH)
    T, B, DH = s.shape
    bidx = lax.broadcasted_iota(jnp.int32, (T, B, DH), 1)

    # Masked full-width reductions (no sub-sublane slicing).
    feats = []
    for lo, hi in bins:                             # adaptive avg pool
        m = (bidx >= lo) & (bidx < hi)
        feats.append(jnp.sum(jnp.where(m, s, 0.0), axis=1) * (1.0 / (hi - lo)))
    for lo, hi in bins:                             # adaptive max pool
        m = (bidx >= lo) & (bidx < hi)
        feats.append(jnp.max(jnp.where(m, s, -jnp.inf), axis=1))
    # Block layout [avg_b0 | avg_b1 | max_b0 | max_b1]; first decoder weight's
    # rows were permuted in the wrapper to match PyTorch's interleaved layout.
    y = jnp.concatenate(feats, axis=1)              # (T, 4*DH)

    for li, relu in enumerate(relus):
        w = wb_refs[2 * li][...]
        b = wb_refs[2 * li + 1][...]
        y = jnp.dot(y, w, preferred_element_type=jnp.float32) + b
        if relu:
            y = jnp.maximum(y, 0.0)
    out_ref[...] = y


def pooled_decoder(states, decoder_params):
    T, B, DH = states.shape
    bins = tuple((k * B // 2, -(-((k + 1) * B) // 2)) for k in range(2))

    # PyTorch builds the decoder input as the flattened (DH, 2) pooled tensor
    # (index = feature*2 + bin) for avg then max.  Permute the rows of the
    # first decoder weight so the kernel's block layout gives identical math.
    w0, b0, r0 = decoder_params[0]
    f = jnp.arange(DH)
    perm = jnp.concatenate([
        f * 2 + 0,                  # avg, bin 0
        f * 2 + 1,                  # avg, bin 1
        2 * DH + f * 2 + 0,         # max, bin 0
        2 * DH + f * 2 + 1,         # max, bin 1
    ])
    params = [(w0[perm, :], b0, r0)] + list(decoder_params[1:])

    relus = tuple(p[2] for p in params)
    flat = []
    for (w, b, _) in params:
        flat += [w, b]
    labels = params[-1][0].shape[1]
    kernel = functools.partial(_decoder_kernel, bins=bins, relus=relus)
    return pl.pallas_call(
        kernel,
        out_shape=jax.ShapeDtypeStruct((T, labels), jnp.float32),
    )(states, *flat)


# ----------------------------------------------------------------------------
# Full forward pass (matches RNN.forward semantics)
# ----------------------------------------------------------------------------
def rnn_forward_pallas(inputs, params, num_layers, bidirectional):
    x = inputs                                       # (T, B, 1), time-major
    num_dir = 2 if bidirectional else 1
    for layer in range(num_layers):
        layer_p = params["lstm"][layer]
        wih_cat = jnp.concatenate([layer_p[d][0] for d in range(num_dir)], axis=1)
        whh_stack = jnp.stack([layer_p[d][1] for d in range(num_dir)], axis=0)
        b_cat = jnp.concatenate([layer_p[d][2] for d in range(num_dir)], axis=1)
        x = lstm_layer(x, wih_cat, whh_stack, b_cat)  # (T, B, D*H)
    return pooled_decoder(x, params["decoder"])


# ----------------------------------------------------------------------------
# Pure-JAX reference (ground truth)
# ----------------------------------------------------------------------------
def _lstm_layer_ref(x, wih, whh, b):
    T, B, _ = x.shape
    H = whh.shape[0]
    h = jnp.zeros((B, H), jnp.float32)
    c = jnp.zeros((B, H), jnp.float32)
    outs = []
    for t in range(T):
        gates = x[t] @ wih + h @ whh + b
        i = jax.nn.sigmoid(gates[:, 0:H])
        f = jax.nn.sigmoid(gates[:, H:2 * H])
        g = jnp.tanh(gates[:, 2 * H:3 * H])
        o = jax.nn.sigmoid(gates[:, 3 * H:4 * H])
        c = f * c + i * g
        h = o * jnp.tanh(c)
        outs.append(h)
    return jnp.stack(outs, axis=0)


def rnn_forward_ref(inputs, params, num_layers, bidirectional):
    x = inputs
    num_dir = 2 if bidirectional else 1
    for layer in range(num_layers):
        outs = []
        for d in range(num_dir):
            wih, whh, b = params["lstm"][layer][d]
            xi = x[::-1] if d == 1 else x
            h = _lstm_layer_ref(xi, wih, whh, b)
            if d == 1:
                h = h[::-1]
            outs.append(h)
        x = outs[0] if num_dir == 1 else jnp.concatenate(outs, axis=-1)
    T, B, DH = x.shape
    bins = [(k * B // 2, -(-((k + 1) * B) // 2)) for k in range(2)]
    avg = jnp.stack([jnp.mean(x[:, lo:hi, :], axis=1) for lo, hi in bins], axis=1)
    mx = jnp.stack([jnp.max(x[:, lo:hi, :], axis=1) for lo, hi in bins], axis=1)
    avg_flat = jnp.transpose(avg, (0, 2, 1)).reshape(T, 2 * DH)
    max_flat = jnp.transpose(mx, (0, 2, 1)).reshape(T, 2 * DH)
    y = jnp.concatenate([avg_flat, max_flat], axis=1)
    for (w, b, relu) in params["decoder"]:
        y = y @ w + b
        if relu:
            y = jnp.maximum(y, 0.0)
    return y


# ----------------------------------------------------------------------------
# Deterministic parameter init (matches the module's shapes; synthetic values)
# ----------------------------------------------------------------------------
def init_params(key, num_hiddens, num_layers, bidirectional, labels):
    H = num_hiddens
    D = 2 if bidirectional else 1
    params = {"lstm": [], "decoder": []}
    keys = jax.random.split(key, 64)
    kit = iter(range(64))

    def u(shape, bound):
        return jax.random.uniform(keys[next(kit)], shape, jnp.float32, -bound, bound)

    bound_lstm = 1.0 / float(jnp.sqrt(H))
    for layer in range(num_layers):
        in_size = 1 if layer == 0 else D * H
        dirs = []
        for _ in range(D):
            wih = u((in_size, 4 * H), bound_lstm)   # W_ih^T
            whh = u((H, 4 * H), bound_lstm)         # W_hh^T
            b = u((1, 4 * H), bound_lstm) + u((1, 4 * H), bound_lstm)  # b_ih + b_hh
            dirs.append((wih, whh, b))
        params["lstm"].append(dirs)

    if bidirectional:
        dims = [(H * 8, 512, True), (512, 128, True), (128, labels, False)]
    else:
        dims = [(H * 4, 512, True), (512, labels, False)]
    for fin, fout, relu in dims:
        bound = 1.0 / float(jnp.sqrt(fin))
        params["decoder"].append((u((fin, fout), bound), u((1, fout), bound), relu))
    return params


if __name__ == "__main__":
    num_hiddens, num_layers, bidirectional, labels = 32, 2, True, 10
    T, B = 8, 4  # seq len, batch (input_size = 1 as in the module)

    key = jax.random.PRNGKey(0)
    pkey, xkey = jax.random.split(key)
    params = init_params(pkey, num_hiddens, num_layers, bidirectional, labels)
    inputs = jax.random.normal(xkey, (T, B, 1), jnp.float32)

    out = jax.block_until_ready(
        rnn_forward_pallas(inputs, params, num_layers, bidirectional))
    ref = jax.block_until_ready(
        rnn_forward_ref(inputs, params, num_layers, bidirectional))

    assert out.shape == (T, labels), out.shape
    assert jnp.allclose(out, ref, rtol=1e-2, atol=1e-2), float(jnp.max(jnp.abs(out - ref)))
    print("KERNEL_OK")
</pallas_src>

<mosaic_0001>
module attributes {stable_mosaic.version = 11 : i64} {
  func.func @_lstm_layer_kernel(%arg0: memref<32x1xf32, #tpu.memory_space<vmem>>, %arg1: memref<1x256xf32, #tpu.memory_space<vmem>>, %arg2: memref<2x32x128xf32, #tpu.memory_space<vmem>>, %arg3: memref<1x256xf32, #tpu.memory_space<vmem>>, %arg4: memref<8x4x64xf32, #tpu.memory_space<vmem>>, %arg5: memref<32x256xf32, #tpu.memory_space<vmem>>) attributes {dimension_semantics = [], scalar_prefetch = 0 : i64, scratch_operands = 1 : i64, tpu.core_type = #tpu.core_type<tc>} {
    %c0 = arith.constant 0 : index
    %c0_0 = arith.constant 0 : index
    %0 = vector.load %arg0[%c0, %c0_0] : memref<32x1xf32, #tpu.memory_space<vmem>>, vector<32x1xf32>
    %c0_1 = arith.constant 0 : index
    %c0_2 = arith.constant 0 : index
    %1 = vector.load %arg1[%c0_1, %c0_2] : memref<1x256xf32, #tpu.memory_space<vmem>>, vector<1x256xf32>
    %2 = vector.broadcast %0 : vector<32x1xf32> to vector<32x256xf32>
    %3 = vector.broadcast %1 : vector<1x256xf32> to vector<32x256xf32>
    %4 = arith.mulf %2, %3 : vector<32x256xf32>
    %c0_3 = arith.constant 0 : index
    %c0_4 = arith.constant 0 : index
    %5 = vector.load %arg3[%c0_3, %c0_4] : memref<1x256xf32, #tpu.memory_space<vmem>>, vector<1x256xf32>
    %6 = vector.broadcast %5 : vector<1x256xf32> to vector<32x256xf32>
    %7 = arith.addf %4, %6 : vector<32x256xf32>
    %c0_5 = arith.constant 0 : index
    %c0_6 = arith.constant 0 : index
    %8 = vector.load %arg5[%c0_5, %c0_6] : memref<32x256xf32, #tpu.memory_space<vmem>>, vector<32x256xf32>
    tpu.vector_store %arg5[%c0_5, %c0_6], %7 {strides = array<i32>} : memref<32x256xf32, #tpu.memory_space<vmem>>, vector<32x256xf32>,
    %c0_7 = arith.constant 0 : index
    %c0_8 = arith.constant 0 : index
    %c0_9 = arith.constant 0 : index
    %9 = vector.load %arg2[%c0_7, %c0_8, %c0_9] : memref<2x32x128xf32, #tpu.memory_space<vmem>>, vector<1x32x128xf32>
    %10 = vector.shape_cast %9 : vector<1x32x128xf32> to vector<32x128xf32>
    %c1 = arith.constant 1 : index
    %c0_10 = arith.constant 0 : index
    %c0_11 = arith.constant 0 : index
    %11 = vector.load %arg2[%c1, %c0_10, %c0_11] : memref<2x32x128xf32, #tpu.memory_space<vmem>>, vector<1x32x128xf32>
    %12 = vector.shape_cast %11 : vector<1x32x128xf32> to vector<32x128xf32>
    %cst = arith.constant 0.000000e+00 : f32
    %13 = vector.broadcast %cst : f32 to vector<4x32xf32>
    %cst_12 = arith.constant 0.000000e+00 : f32
    %14 = vector.broadcast %cst_12 : f32 to vector<4x32xf32>
    %cst_13 = arith.constant 0.000000e+00 : f32
    %15 = vector.broadcast %cst_13 : f32 to vector<4x32xf32>
    %cst_14 = arith.constant 0.000000e+00 : f32
    %16 = vector.broadcast %cst_14 : f32 to vector<4x32xf32>
    %c0_15 = arith.constant 0 : index
    %c0_16 = arith.constant 0 : index
    %17 = vector.load %arg5[%c0_15, %c0_16] : memref<32x256xf32, #tpu.memory_space<vmem>>, vector<4x128xf32>
    %cst_17 = arith.constant dense<0.000000e+00> : vector<4x128xf32>
    %18 = tpu.matmul %13, %10, %cst_17 {dimension_numbers = #tpu.dot_dimension_numbers<[1], [0], [0], [1], [0, 0, 1, 1], [], []>} : vector<4x32xf32>, vector<32x128xf32>, vector<4x128xf32> -> vector<4x128xf32>
    %19 = arith.addf %17, %18 : vector<4x128xf32>
    %20 = vector.extract_strided_slice %19 {offsets = [0, 0], sizes = [4, 32], strides = [1, 1]} : vector<4x128xf32> to vector<4x32xf32>
    %21 = arith.negf %20 : vector<4x32xf32>
    %22 = math.exp %21 : vector<4x32xf32>
    %cst_18 = arith.constant 1.000000e+00 : f32
    %23 = vector.broadcast %cst_18 : f32 to vector<4x32xf32>
    %24 = arith.addf %23, %22 : vector<4x32xf32>
    %25 = arith.divf %23, %24 : vector<4x32xf32>
    %26 = vector.extract_strided_slice %19 {offsets = [0, 32], sizes = [4, 32], strides = [1, 1]} : vector<4x128xf32> to vector<4x32xf32>
    %27 = arith.negf %26 : vector<4x32xf32>
    %28 = math.exp %27 : vector<4x32xf32>
    %cst_19 = arith.constant 1.000000e+00 : f32
    %29 = vector.broadcast %cst_19 : f32 to vector<4x32xf32>
    %30 = arith.addf %29, %28 : vector<4x32xf32>
    %31 = arith.divf %29, %30 : vector<4x32xf32>
    %32 = vector.extract_strided_slice %19 {offsets = [0, 64], sizes = [4, 32], strides = [1, 1]} : vector<4x128xf32> to vector<4x32xf32>
    %33 = math.tanh %32 : vector<4x32xf32>
    %34 = vector.extract_strided_slice %19 {offsets = [0, 96], sizes = [4, 32], strides = [1, 1]} : vector<4x128xf32> to vector<4x32xf32>
    %35 = arith.negf %34 : vector<4x32xf32>
    %36 = math.exp %35 : vector<4x32xf32>
    %cst_20 = arith.constant 1.000000e+00 : f32
    %37 = vector.broadcast %cst_20 : f32 to vector<4x32xf32>
    %38 = arith.addf %37, %36 : vector<4x32xf32>
    %39 = arith.divf %37, %38 : vector<4x32xf32>
    %40 = arith.mulf %31, %15 : vector<4x32xf32>
    %41 = arith.mulf %25, %33 : vector<4x32xf32>
    %42 = arith.addf %40, %41 : vector<4x32xf32>
    %43 = math.tanh %42 : vector<4x32xf32>
    %44 = arith.mulf %39, %43 : vector<4x32xf32>
    %c0_21 = arith.constant 0 : index
    %c0_22 = arith.constant 0 : index
    %c0_23 = arith.constant 0 : index
    %45 = vector.load %arg4[%c0_21, %c0_22, %c0_23] : memref<8x4x64xf32, #tpu.memory_space<vmem>>, vector<1x4x32xf32>
    %46 = vector.shape_cast %45 : vector<1x4x32xf32> to vector<4x32xf32>
    %47 = vector.shape_cast %44 : vector<4x32xf32> to vector<1x4x32xf32>
    tpu.vector_store %arg4[%c0_21, %c0_22, %c0_23], %47 {strides = array<i32>} : memref<8x4x64xf32, #tpu.memory_space<vmem>>, vector<1x4x32xf32>,
    %c28 = arith.constant 28 : index
    %c128 = arith.constant 128 : index
    %48 = vector.load %arg5[%c28, %c128] : memref<32x256xf32, #tpu.memory_space<vmem>>, vector<4x128xf32>
    %cst_24 = arith.constant dense<0.000000e+00> : vector<4x128xf32>
    %49 = tpu.matmul %14, %12, %cst_24 {dimension_numbers = #tpu.dot_dimension_numbers<[1], [0], [0], [1], [0, 0, 1, 1], [], []>} : vector<4x32xf32>, vector<32x128xf32>, vector<4x128xf32> -> vector<4x128xf32>
    %50 = arith.addf %48, %49 : vector<4x128xf32>
    %51 = vector.extract_strided_slice %50 {offsets = [0, 0], sizes = [4, 32], strides = [1, 1]} : vector<4x128xf32> to vector<4x32xf32>
    %52 = arith.negf %51 : vector<4x32xf32>
    %53 = math.exp %52 : vector<4x32xf32>
    %cst_25 = arith.constant 1.000000e+00 : f32
    %54 = vector.broadcast %cst_25 : f32 to vector<4x32xf32>
    %55 = arith.addf %54, %53 : vector<4x32xf32>
    %56 = arith.divf %54, %55 : vector<4x32xf32>
    %57 = vector.extract_strided_slice %50 {offsets = [0, 32], sizes = [4, 32], strides = [1, 1]} : vector<4x128xf32> to vector<4x32xf32>
    %58 = arith.negf %57 : vector<4x32xf32>
    %59 = math.exp %58 : vector<4x32xf32>
    %cst_26 = arith.constant 1.000000e+00 : f32
    %60 = vector.broadcast %cst_26 : f32 to vector<4x32xf32>
    %61 = arith.addf %60, %59 : vector<4x32xf32>
    %62 = arith.divf %60, %61 : vector<4x32xf32>
    %63 = vector.extract_strided_slice %50 {offsets = [0, 64], sizes = [4, 32], strides = [1, 1]} : vector<4x128xf32> to vector<4x32xf32>
    %64 = math.tanh %63 : vector<4x32xf32>
    %65 = vector.extract_strided_slice %50 {offsets = [0, 96], sizes = [4, 32], strides = [1, 1]} : vector<4x128xf32> to vector<4x32xf32>
    %66 = arith.negf %65 : vector<4x32xf32>
    %67 = math.exp %66 : vector<4x32xf32>
    %cst_27 = arith.constant 1.000000e+00 : f32
    %68 = vector.broadcast %cst_27 : f32 to vector<4x32xf32>
    %69 = arith.addf %68, %67 : vector<4x32xf32>
    %70 = arith.divf %68, %69 : vector<4x32xf32>
    %71 = arith.mulf %62, %16 : vector<4x32xf32>
    %72 = arith.mulf %56, %64 : vector<4x32xf32>
    %73 = arith.addf %71, %72 : vector<4x32xf32>
    %74 = math.tanh %73 : vector<4x32xf32>
    %75 = arith.mulf %70, %74 : vector<4x32xf32>
    %c7 = arith.constant 7 : index
    %c0_28 = arith.constant 0 : index
    %c32 = arith.constant 32 : index
    %76 = vector.load %arg4[%c7, %c0_28, %c32] : memref<8x4x64xf32, #tpu.memory_space<vmem>>, vector<1x4x32xf32>
    %77 = vector.shape_cast %76 : vector<1x4x32xf32> to vector<4x32xf32>
    %78 = vector.shape_cast %75 : vector<4x32xf32> to vector<1x4x32xf32>
    tpu.vector_store %arg4[%c7, %c0_28, %c32], %78 {strides = array<i32>} : memref<8x4x64xf32, #tpu.memory_space<vmem>>, vector<1x4x32xf32>,
    %c4 = arith.constant 4 : index
    %c0_29 = arith.constant 0 : index
    %79 = vector.load %arg5[%c4, %c0_29] : memref<32x256xf32, #tpu.memory_space<vmem>>, vector<4x128xf32>
    %cst_30 = arith.constant dense<0.000000e+00> : vector<4x128xf32>
    %80 = tpu.matmul %44, %10, %cst_30 {dimension_numbers = #tpu.dot_dimension_numbers<[1], [0], [0], [1], [0, 0, 1, 1], [], []>} : vector<4x32xf32>, vector<32x128xf32>, vector<4x128xf32> -> vector<4x128xf32>
    %81 = arith.addf %79, %80 : vector<4x128xf32>
    %82 = vector.extract_strided_slice %81 {offsets = [0, 0], sizes = [4, 32], strides = [1, 1]} : vector<4x128xf32> to vector<4x32xf32>
    %83 = arith.negf %82 : vector<4x32xf32>
    %84 = math.exp %83 : vector<4x32xf32>
    %cst_31 = arith.constant 1.000000e+00 : f32
    %85 = vector.broadcast %cst_31 : f32 to vector<4x32xf32>
    %86 = arith.addf %85, %84 : vector<4x32xf32>
    %87 = arith.divf %85, %86 : vector<4x32xf32>
    %88 = vector.extract_strided_slice %81 {offsets = [0, 32], sizes = [4, 32], strides = [1, 1]} : vector<4x128xf32> to vector<4x32xf32>
    %89 = arith.negf %88 : vector<4x32xf32>
    %90 = math.exp %89 : vector<4x32xf32>
    %cst_32 = arith.constant 1.000000e+00 : f32
    %91 = vector.broadcast %cst_32 : f32 to vector<4x32xf32>
    %92 = arith.addf %91, %90 : vector<4x32xf32>
    %93 = arith.divf %91, %92 : vector<4x32xf32>
    %94 = vector.extract_strided_slice %81 {offsets = [0, 64], sizes = [4, 32], strides = [1, 1]} : vector<4x128xf32> to vector<4x32xf32>
    %95 = math.tanh %94 : vector<4x32xf32>
    %96 = vector.extract_strided_slice %81 {offsets = [0, 96], sizes = [4, 32], strides = [1, 1]} : vector<4x128xf32> to vector<4x32xf32>
    %97 = arith.negf %96 : vector<4x32xf32>
    %98 = math.exp %97 : vector<4x32xf32>
    %cst_33 = arith.constant 1.000000e+00 : f32
    %99 = vector.broadcast %cst_33 : f32 to vector<4x32xf32>
    %100 = arith.addf %99, %98 : vector<4x32xf32>
    %101 = arith.divf %99, %100 : vector<4x32xf32>
    %102 = arith.mulf %93, %42 : vector<4x32xf32>
    %103 = arith.mulf %87, %95 : vector<4x32xf32>
    %104 = arith.addf %102, %103 : vector<4x32xf32>
    %105 = math.tanh %104 : vector<4x32xf32>
    %106 = arith.mulf %101, %105 : vector<4x32xf32>
    %c1_34 = arith.constant 1 : index
    %c0_35 = arith.constant 0 : index
    %c0_36 = arith.constant 0 : index
    %107 = vector.load %arg4[%c1_34, %c0_35, %c0_36] : memref<8x4x64xf32, #tpu.memory_space<vmem>>, vector<1x4x32xf32>
    %108 = vector.shape_cast %107 : vector<1x4x32xf32> to vector<4x32xf32>
    %109 = vector.shape_cast %106 : vector<4x32xf32> to vector<1x4x32xf32>
    tpu.vector_store %arg4[%c1_34, %c0_35, %c0_36], %109 {strides = array<i32>} : memref<8x4x64xf32, #tpu.memory_space<vmem>>, vector<1x4x32xf32>,
    %c24 = arith.constant 24 : index
    %c128_37 = arith.constant 128 : index
    %110 = vector.load %arg5[%c24, %c128_37] : memref<32x256xf32, #tpu.memory_space<vmem>>, vector<4x128xf32>
    %cst_38 = arith.constant dense<0.000000e+00> : vector<4x128xf32>
    %111 = tpu.matmul %75, %12, %cst_38 {dimension_numbers = #tpu.dot_dimension_numbers<[1], [0], [0], [1], [0, 0, 1, 1], [], []>} : vector<4x32xf32>, vector<32x128xf32>, vector<4x128xf32> -> vector<4x128xf32>
    %112 = arith.addf %110, %111 : vector<4x128xf32>
    %113 = vector.extract_strided_slice %112 {offsets = [0, 0], sizes = [4, 32], strides = [1, 1]} : vector<4x128xf32> to vector<4x32xf32>
    %114 = arith.negf %113 : vector<4x32xf32>
    %115 = math.exp %114 : vector<4x32xf32>
    %cst_39 = arith.constant 1.000000e+00 : f32
    %116 = vector.broadcast %cst_39 : f32 to vector<4x32xf32>
    %117 = arith.addf %116, %115 : vector<4x32xf32>
    %118 = arith.divf %116, %117 : vector<4x32xf32>
    %119 = vector.extract_strided_slice %112 {offsets = [0, 32], sizes = [4, 32], strides = [1, 1]} : vector<4x128xf32> to vector<4x32xf32>
    %120 = arith.negf %119 : vector<4x32xf32>
    %121 = math.exp %120 : vector<4x32xf32>
    %cst_40 = arith.constant 1.000000e+00 : f32
    %122 = vector.broadcast %cst_40 : f32 to vector<4x32xf32>
    %123 = arith.addf %122, %121 : vector<4x32xf32>
    %124 = arith.divf %122, %123 : vector<4x32xf32>
    %125 = vector.extract_strided_slice %112 {offsets = [0, 64], sizes = [4, 32], strides = [1, 1]} : vector<4x128xf32> to vector<4x32xf32>
    %126 = math.tanh %125 : vector<4x32xf32>
    %127 = vector.extract_strided_slice %112 {offsets = [0, 96], sizes = [4, 32], strides = [1, 1]} : vector<4x128xf32> to vector<4x32xf32>
    %128 = arith.negf %127 : vector<4x32xf32>
    %129 = math.exp %128 : vector<4x32xf32>
    %cst_41 = arith.constant 1.000000e+00 : f32
    %130 = vector.broadcast %cst_41 : f32 to vector<4x32xf32>
    %131 = arith.addf %130, %129 : vector<4x32xf32>
    %132 = arith.divf %130, %131 : vector<4x32xf32>
    %133 = arith.mulf %124, %73 : vector<4x32xf32>
    %134 = arith.mulf %118, %126 : vector<4x32xf32>
    %135 = arith.addf %133, %134 : vector<4x32xf32>
    %136 = math.tanh %135 : vector<4x32xf32>
    %137 = arith.mulf %132, %136 : vector<4x32xf32>
    %c6 = arith.constant 6 : index
    %c0_42 = arith.constant 0 : index
    %c32_43 = arith.constant 32 : index
    %138 = vector.load %arg4[%c6, %c0_42, %c32_43] : memref<8x4x64xf32, #tpu.memory_space<vmem>>, vector<1x4x32xf32>
    %139 = vector.shape_cast %138 : vector<1x4x32xf32> to vector<4x32xf32>
    %140 = vector.shape_cast %137 : vector<4x32xf32> to vector<1x4x32xf32>
    tpu.vector_store %arg4[%c6, %c0_42, %c32_43], %140 {strides = array<i32>} : memref<8x4x64xf32, #tpu.memory_space<vmem>>, vector<1x4x32xf32>,
    %c8 = arith.constant 8 : index
    %c0_44 = arith.constant 0 : index
    %141 = vector.load %arg5[%c8, %c0_44] : memref<32x256xf32, #tpu.memory_space<vmem>>, vector<4x128xf32>
    %cst_45 = arith.constant dense<0.000000e+00> : vector<4x128xf32>
    %142 = tpu.matmul %106, %10, %cst_45 {dimension_numbers = #tpu.dot_dimension_numbers<[1], [0], [0], [1], [0, 0, 1, 1], [], []>} : vector<4x32xf32>, vector<32x128xf32>, vector<4x128xf32> -> vector<4x128xf32>
    %143 = arith.addf %141, %142 : vector<4x128xf32>
    %144 = vector.extract_strided_slice %143 {offsets = [0, 0], sizes = [4, 32], strides = [1, 1]} : vector<4x128xf32> to vector<4x32xf32>
    %145 = arith.negf %144 : vector<4x32xf32>
    %146 = math.exp %145 : vector<4x32xf32>
    %cst_46 = arith.constant 1.000000e+00 : f32
    %147 = vector.broadcast %cst_46 : f32 to vector<4x32xf32>
    %148 = arith.addf %147, %146 : vector<4x32xf32>
    %149 = arith.divf %147, %148 : vector<4x32xf32>
    %150 = vector.extract_strided_slice %143 {offsets = [0, 32], sizes = [4, 32], strides = [1, 1]} : vector<4x128xf32> to vector<4x32xf32>
    %151 = arith.negf %150 : vector<4x32xf32>
    %152 = math.exp %151 : vector<4x32xf32>
    %cst_47 = arith.constant 1.000000e+00 : f32
    %153 = vector.broadcast %cst_47 : f32 to vector<4x32xf32>
    %154 = arith.addf %153, %152 : vector<4x32xf32>
    %155 = arith.divf %153, %154 : vector<4x32xf32>
    %156 = vector.extract_strided_slice %143 {offsets = [0, 64], sizes = [4, 32], strides = [1, 1]} : vector<4x128xf32> to vector<4x32xf32>
    %157 = math.tanh %156 : vector<4x32xf32>
    %158 = vector.extract_strided_slice %143 {offsets = [0, 96], sizes = [4, 32], strides = [1, 1]} : vector<4x128xf32> to vector<4x32xf32>
    %159 = arith.negf %158 : vector<4x32xf32>
    %160 = math.exp %159 : vector<4x32xf32>
    %cst_48 = arith.constant 1.000000e+00 : f32
    %161 = vector.broadcast %cst_48 : f32 to vector<4x32xf32>
    %162 = arith.addf %161, %160 : vector<4x32xf32>
    %163 = arith.divf %161, %162 : vector<4x32xf32>
    %164 = arith.mulf %155, %104 : vector<4x32xf32>
    %165 = arith.mulf %149, %157 : vector<4x32xf32>
    %166 = arith.addf %164, %165 : vector<4x32xf32>
    %167 = math.tanh %166 : vector<4x32xf32>
    %168 = arith.mulf %163, %167 : vector<4x32xf32>
    %c2 = arith.constant 2 : index
    %c0_49 = arith.constant 0 : index
    %c0_50 = arith.constant 0 : index
    %169 = vector.load %arg4[%c2, %c0_49, %c0_50] : memref<8x4x64xf32, #tpu.memory_space<vmem>>, vector<1x4x32xf32>
    %170 = vector.shape_cast %169 : vector<1x4x32xf32> to vector<4x32xf32>
    %171 = vector.shape_cast %168 : vector<4x32xf32> to vector<1x4x32xf32>
    tpu.vector_store %arg4[%c2, %c0_49, %c0_50], %171 {strides = array<i32>} : memref<8x4x64xf32, #tpu.memory_space<vmem>>, vector<1x4x32xf32>,
    %c20 = arith.constant 20 : index
    %c128_51 = arith.constant 128 : index
    %172 = vector.load %arg5[%c20, %c128_51] : memref<32x256xf32, #tpu.memory_space<vmem>>, vector<4x128xf32>
    %cst_52 = arith.constant dense<0.000000e+00> : vector<4x128xf32>
    %173 = tpu.matmul %137, %12, %cst_52 {dimension_numbers = #tpu.dot_dimension_numbers<[1], [0], [0], [1], [0, 0, 1, 1], [], []>} : vector<4x32xf32>, vector<32x128xf32>, vector<4x128xf32> -> vector<4x128xf32>
    %174 = arith.addf %172, %173 : vector<4x128xf32>
    %175 = vector.extract_strided_slice %174 {offsets = [0, 0], sizes = [4, 32], strides = [1, 1]} : vector<4x128xf32> to vector<4x32xf32>
    %176 = arith.negf %175 : vector<4x32xf32>
    %177 = math.exp %176 : vector<4x32xf32>
    %cst_53 = arith.constant 1.000000e+00 : f32
    %178 = vector.broadcast %cst_53 : f32 to vector<4x32xf32>
    %179 = arith.addf %178, %177 : vector<4x32xf32>
    %180 = arith.divf %178, %179 : vector<4x32xf32>
    %181 = vector.extract_strided_slice %174 {offsets = [0, 32], sizes = [4, 32], strides = [1, 1]} : vector<4x128xf32> to vector<4x32xf32>
    %182 = arith.negf %181 : vector<4x32xf32>
    %183 = math.exp %182 : vector<4x32xf32>
    %cst_54 = arith.constant 1.000000e+00 : f32
    %184 = vector.broadcast %cst_54 : f32 to vector<4x32xf32>
    %185 = arith.addf %184, %183 : vector<4x32xf32>
    %186 = arith.divf %184, %185 : vector<4x32xf32>
    %187 = vector.extract_strided_slice %174 {offsets = [0, 64], sizes = [4, 32], strides = [1, 1]} : vector<4x128xf32> to vector<4x32xf32>
    %188 = math.tanh %187 : vector<4x32xf32>
    %189 = vector.extract_strided_slice %174 {offsets = [0, 96], sizes = [4, 32], strides = [1, 1]} : vector<4x128xf32> to vector<4x32xf32>
    %190 = arith.negf %189 : vector<4x32xf32>
    %191 = math.exp %190 : vector<4x32xf32>
    %cst_55 = arith.constant 1.000000e+00 : f32
    %192 = vector.broadcast %cst_55 : f32 to vector<4x32xf32>
    %193 = arith.addf %192, %191 : vector<4x32xf32>
    %194 = arith.divf %192, %193 : vector<4x32xf32>
    %195 = arith.mulf %186, %135 : vector<4x32xf32>
    %196 = arith.mulf %180, %188 : vector<4x32xf32>
    %197 = arith.addf %195, %196 : vector<4x32xf32>
    %198 = math.tanh %197 : vector<4x32xf32>
    %199 = arith.mulf %194, %198 : vector<4x32xf32>
    %c5 = arith.constant 5 : index
    %c0_56 = arith.constant 0 : index
    %c32_57 = arith.constant 32 : index
    %200 = vector.load %arg4[%c5, %c0_56, %c32_57] : memref<8x4x64xf32, #tpu.memory_space<vmem>>, vector<1x4x32xf32>
    %201 = vector.shape_cast %200 : vector<1x4x32xf32> to vector<4x32xf32>
    %202 = vector.shape_cast %199 : vector<4x32xf32> to vector<1x4x32xf32>
    tpu.vector_store %arg4[%c5, %c0_56, %c32_57], %202 {strides = array<i32>} : memref<8x4x64xf32, #tpu.memory_space<vmem>>, vector<1x4x32xf32>,
    %c12 = arith.constant 12 : index
    %c0_58 = arith.constant 0 : index
    %203 = vector.load %arg5[%c12, %c0_58] : memref<32x256xf32, #tpu.memory_space<vmem>>, vector<4x128xf32>
    %cst_59 = arith.constant dense<0.000000e+00> : vector<4x128xf32>
    %204 = tpu.matmul %168, %10, %cst_59 {dimension_numbers = #tpu.dot_dimension_numbers<[1], [0], [0], [1], [0, 0, 1, 1], [], []>} : vector<4x32xf32>, vector<32x128xf32>, vector<4x128xf32> -> vector<4x128xf32>
    %205 = arith.addf %203, %204 : vector<4x128xf32>
    %206 = vector.extract_strided_slice %205 {offsets = [0, 0], sizes = [4, 32], strides = [1, 1]} : vector<4x128xf32> to vector<4x32xf32>
    %207 = arith.negf %206 : vector<4x32xf32>
    %208 = math.exp %207 : vector<4x32xf32>
    %cst_60 = arith.constant 1.000000e+00 : f32
    %209 = vector.broadcast %cst_60 : f32 to vector<4x32xf32>
    %210 = arith.addf %209, %208 : vector<4x32xf32>
    %211 = arith.divf %209, %210 : vector<4x32xf32>
    %212 = vector.extract_strided_slice %205 {offsets = [0, 32], sizes = [4, 32], strides = [1, 1]} : vector<4x128xf32> to vector<4x32xf32>
    %213 = arith.negf %212 : vector<4x32xf32>
    %214 = math.exp %213 : vector<4x32xf32>
    %cst_61 = arith.constant 1.000000e+00 : f32
    %215 = vector.broadcast %cst_61 : f32 to vector<4x32xf32>
    %216 = arith.addf %215, %214 : vector<4x32xf32>
    %217 = arith.divf %215, %216 : vector<4x32xf32>
    %218 = vector.extract_strided_slice %205 {offsets = [0, 64], sizes = [4, 32], strides = [1, 1]} : vector<4x128xf32> to vector<4x32xf32>
    %219 = math.tanh %218 : vector<4x32xf32>
    %220 = vector.extract_strided_slice %205 {offsets = [0, 96], sizes = [4, 32], strides = [1, 1]} : vector<4x128xf32> to vector<4x32xf32>
    %221 = arith.negf %220 : vector<4x32xf32>
    %222 = math.exp %221 : vector<4x32xf32>
    %cst_62 = arith.constant 1.000000e+00 : f32
    %223 = vector.broadcast %cst_62 : f32 to vector<4x32xf32>
    %224 = arith.addf %223, %222 : vector<4x32xf32>
    %225 = arith.divf %223, %224 : vector<4x32xf32>
    %226 = arith.mulf %217, %166 : vector<4x32xf32>
    %227 = arith.mulf %211, %219 : vector<4x32xf32>
    %228 = arith.addf %226, %227 : vector<4x32xf32>
    %229 = math.tanh %228 : vector<4x32xf32>
    %230 = arith.mulf %225, %229 : vector<4x32xf32>
    %c3 = arith.constant 3 : index
    %c0_63 = arith.constant 0 : index
    %c0_64 = arith.constant 0 : index
    %231 = vector.load %arg4[%c3, %c0_63, %c0_64] : memref<8x4x64xf32, #tpu.memory_space<vmem>>, vector<1x4x32xf32>
    %232 = vector.shape_cast %231 : vector<1x4x32xf32> to vector<4x32xf32>
    %233 = vector.shape_cast %230 : vector<4x32xf32> to vector<1x4x32xf32>
    tpu.vector_store %arg4[%c3, %c0_63, %c0_64], %233 {strides = array<i32>} : memref<8x4x64xf32, #tpu.memory_space<vmem>>, vector<1x4x32xf32>,
    %c16 = arith.constant 16 : index
    %c128_65 = arith.constant 128 : index
    %234 = vector.load %arg5[%c16, %c128_65] : memref<32x256xf32, #tpu.memory_space<vmem>>, vector<4x128xf32>
    %cst_66 = arith.constant dense<0.000000e+00> : vector<4x128xf32>
    %235 = tpu.matmul %199, %12, %cst_66 {dimension_numbers = #tpu.dot_dimension_numbers<[1], [0], [0], [1], [0, 0, 1, 1], [], []>} : vector<4x32xf32>, vector<32x128xf32>, vector<4x128xf32> -> vector<4x128xf32>
    %236 = arith.addf %234, %235 : vector<4x128xf32>
    %237 = vector.extract_strided_slice %236 {offsets = [0, 0], sizes = [4, 32], strides = [1, 1]} : vector<4x128xf32> to vector<4x32xf32>
    %238 = arith.negf %237 : vector<4x32xf32>
    %239 = math.exp %238 : vector<4x32xf32>
    %cst_67 = arith.constant 1.000000e+00 : f32
    %240 = vector.broadcast %cst_67 : f32 to vector<4x32xf32>
    %241 = arith.addf %240, %239 : vector<4x32xf32>
    %242 = arith.divf %240, %241 : vector<4x32xf32>
    %243 = vector.extract_strided_slice %236 {offsets = [0, 32], sizes = [4, 32], strides = [1, 1]} : vector<4x128xf32> to vector<4x32xf32>
    %244 = arith.negf %243 : vector<4x32xf32>
    %245 = math.exp %244 : vector<4x32xf32>
    %cst_68 = arith.constant 1.000000e+00 : f32
    %246 = vector.broadcast %cst_68 : f32 to vector<4x32xf32>
    %247 = arith.addf %246, %245 : vector<4x32xf32>
    %248 = arith.divf %246, %247 : vector<4x32xf32>
    %249 = vector.extract_strided_slice %236 {offsets = [0, 64], sizes = [4, 32], strides = [1, 1]} : vector<4x128xf32> to vector<4x32xf32>
    %250 = math.tanh %249 : vector<4x32xf32>
    %251 = vector.extract_strided_slice %236 {offsets = [0, 96], sizes = [4, 32], strides = [1, 1]} : vector<4x128xf32> to vector<4x32xf32>
    %252 = arith.negf %251 : vector<4x32xf32>
    %253 = math.exp %252 : vector<4x32xf32>
    %cst_69 = arith.constant 1.000000e+00 : f32
    %254 = vector.broadcast %cst_69 : f32 to vector<4x32xf32>
    %255 = arith.addf %254, %253 : vector<4x32xf32>
    %256 = arith.divf %254, %255 : vector<4x32xf32>
    %257 = arith.mulf %248, %197 : vector<4x32xf32>
    %258 = arith.mulf %242, %250 : vector<4x32xf32>
    %259 = arith.addf %257, %258 : vector<4x32xf32>
    %260 = math.tanh %259 : vector<4x32xf32>
    %261 = arith.mulf %256, %260 : vector<4x32xf32>
    %c4_70 = arith.constant 4 : index
    %c0_71 = arith.constant 0 : index
    %c32_72 = arith.constant 32 : index
    %262 = vector.load %arg4[%c4_70, %c0_71, %c32_72] : memref<8x4x64xf32, #tpu.memory_space<vmem>>, vector<1x4x32xf32>
    %263 = vector.shape_cast %262 : vector<1x4x32xf32> to vector<4x32xf32>
    %264 = vector.shape_cast %261 : vector<4x32xf32> to vector<1x4x32xf32>
    tpu.vector_store %arg4[%c4_70, %c0_71, %c32_72], %264 {strides = array<i32>} : memref<8x4x64xf32, #tpu.memory_space<vmem>>, vector<1x4x32xf32>,
    %c16_73 = arith.constant 16 : index
    %c0_74 = arith.constant 0 : index
    %265 = vector.load %arg5[%c16_73, %c0_74] : memref<32x256xf32, #tpu.memory_space<vmem>>, vector<4x128xf32>
    %cst_75 = arith.constant dense<0.000000e+00> : vector<4x128xf32>
    %266 = tpu.matmul %230, %10, %cst_75 {dimension_numbers = #tpu.dot_dimension_numbers<[1], [0], [0], [1], [0, 0, 1, 1], [], []>} : vector<4x32xf32>, vector<32x128xf32>, vector<4x128xf32> -> vector<4x128xf32>
    %267 = arith.addf %265, %266 : vector<4x128xf32>
    %268 = vector.extract_strided_slice %267 {offsets = [0, 0], sizes = [4, 32], strides = [1, 1]} : vector<4x128xf32> to vector<4x32xf32>
    %269 = arith.negf %268 : vector<4x32xf32>
    %270 = math.exp %269 : vector<4x32xf32>
    %cst_76 = arith.constant 1.000000e+00 : f32
    %271 = vector.broadcast %cst_76 : f32 to vector<4x32xf32>
    %272 = arith.addf %271, %270 : vector<4x32xf32>
    %273 = arith.divf %271, %272 : vector<4x32xf32>
    %274 = vector.extract_strided_slice %267 {offsets = [0, 32], sizes = [4, 32], strides = [1, 1]} : vector<4x128xf32> to vector<4x32xf32>
    %275 = arith.negf %274 : vector<4x32xf32>
    %276 = math.exp %275 : vector<4x32xf32>
    %cst_77 = arith.constant 1.000000e+00 : f32
    %277 = vector.broadcast %cst_77 : f32 to vector<4x32xf32>
    %278 = arith.addf %277, %276 : vector<4x32xf32>
    %279 = arith.divf %277, %278 : vector<4x32xf32>
    %280 = vector.extract_strided_slice %267 {offsets = [0, 64], sizes = [4, 32], strides = [1, 1]} : vector<4x128xf32> to vector<4x32xf32>
    %281 = math.tanh %280 : vector<4x32xf32>
    %282 = vector.extract_strided_slice %267 {offsets = [0, 96], sizes = [4, 32], strides = [1, 1]} : vector<4x128xf32> to vector<4x32xf32>
    %283 = arith.negf %282 : vector<4x32xf32>
    %284 = math.exp %283 : vector<4x32xf32>
    %cst_78 = arith.constant 1.000000e+00 : f32
    %285 = vector.broadcast %cst_78 : f32 to vector<4x32xf32>
    %286 = arith.addf %285, %284 : vector<4x32xf32>
    %287 = arith.divf %285, %286 : vector<4x32xf32>
    %288 = arith.mulf %279, %228 : vector<4x32xf32>
    %289 = arith.mulf %273, %281 : vector<4x32xf32>
    %290 = arith.addf %288, %289 : vector<4x32xf32>
    %291 = math.tanh %290 : vector<4x32xf32>
    %292 = arith.mulf %287, %291 : vector<4x32xf32>
    %c4_79 = arith.constant 4 : index
    %c0_80 = arith.constant 0 : index
    %c0_81 = arith.constant 0 : index
    %293 = vector.load %arg4[%c4_79, %c0_80, %c0_81] : memref<8x4x64xf32, #tpu.memory_space<vmem>>, vector<1x4x32xf32>
    %294 = vector.shape_cast %293 : vector<1x4x32xf32> to vector<4x32xf32>
    %295 = vector.shape_cast %292 : vector<4x32xf32> to vector<1x4x32xf32>
    tpu.vector_store %arg4[%c4_79, %c0_80, %c0_81], %295 {strides = array<i32>} : memref<8x4x64xf32, #tpu.memory_space<vmem>>, vector<1x4x32xf32>,
    %c12_82 = arith.constant 12 : index
    %c128_83 = arith.constant 128 : index
    %296 = vector.load %arg5[%c12_82, %c128_83] : memref<32x256xf32, #tpu.memory_space<vmem>>, vector<4x128xf32>
    %cst_84 = arith.constant dense<0.000000e+00> : vector<4x128xf32>
    %297 = tpu.matmul %261, %12, %cst_84 {dimension_numbers = #tpu.dot_dimension_numbers<[1], [0], [0], [1], [0, 0, 1, 1], [], []>} : vector<4x32xf32>, vector<32x128xf32>, vector<4x128xf32> -> vector<4x128xf32>
    %298 = arith.addf %296, %297 : vector<4x128xf32>
    %299 = vector.extract_strided_slice %298 {offsets = [0, 0], sizes = [4, 32], strides = [1, 1]} : vector<4x128xf32> to vector<4x32xf32>
    %300 = arith.negf %299 : vector<4x32xf32>
    %301 = math.exp %300 : vector<4x32xf32>
    %cst_85 = arith.constant 1.000000e+00 : f32
    %302 = vector.broadcast %cst_85 : f32 to vector<4x32xf32>
    %303 = arith.addf %302, %301 : vector<4x32xf32>
    %304 = arith.divf %302, %303 : vector<4x32xf32>
    %305 = vector.extract_strided_slice %298 {offsets = [0, 32], sizes = [4, 32], strides = [1, 1]} : vector<4x128xf32> to vector<4x32xf32>
    %306 = arith.negf %305 : vector<4x32xf32>
    %307 = math.exp %306 : vector<4x32xf32>
    %cst_86 = arith.constant 1.000000e+00 : f32
    %308 = vector.broadcast %cst_86 : f32 to vector<4x32xf32>
    %309 = arith.addf %308, %307 : vector<4x32xf32>
    %310 = arith.divf %308, %309 : vector<4x32xf32>
    %311 = vector.extract_strided_slice %298 {offsets = [0, 64], sizes = [4, 32], strides = [1, 1]} : vector<4x128xf32> to vector<4x32xf32>
    %312 = math.tanh %311 : vector<4x32xf32>
    %313 = vector.extract_strided_slice %298 {offsets = [0, 96], sizes = [4, 32], strides = [1, 1]} : vector<4x128xf32> to vector<4x32xf32>
    %314 = arith.negf %313 : vector<4x32xf32>
    %315 = math.exp %314 : vector<4x32xf32>
    %cst_87 = arith.constant 1.000000e+00 : f32
    %316 = vector.broadcast %cst_87 : f32 to vector<4x32xf32>
    %317 = arith.addf %316, %315 : vector<4x32xf32>
    %318 = arith.divf %316, %317 : vector<4x32xf32>
    %319 = arith.mulf %310, %259 : vector<4x32xf32>
    %320 = arith.mulf %304, %312 : vector<4x32xf32>
    %321 = arith.addf %319, %320 : vector<4x32xf32>
    %322 = math.tanh %321 : vector<4x32xf32>
    %323 = arith.mulf %318, %322 : vector<4x32xf32>
    %c3_88 = arith.constant 3 : index
    %c0_89 = arith.constant 0 : index
    %c32_90 = arith.constant 32 : index
    %324 = vector.load %arg4[%c3_88, %c0_89, %c32_90] : memref<8x4x64xf32, #tpu.memory_space<vmem>>, vector<1x4x32xf32>
    %325 = vector.shape_cast %324 : vector<1x4x32xf32> to vector<4x32xf32>
    %326 = vector.shape_cast %323 : vector<4x32xf32> to vector<1x4x32xf32>
    tpu.vector_store %arg4[%c3_88, %c0_89, %c32_90], %326 {strides = array<i32>} : memref<8x4x64xf32, #tpu.memory_space<vmem>>, vector<1x4x32xf32>,
    %c20_91 = arith.constant 20 : index
    %c0_92 = arith.constant 0 : index
    %327 = vector.load %arg5[%c20_91, %c0_92] : memref<32x256xf32, #tpu.memory_space<vmem>>, vector<4x128xf32>
    %cst_93 = arith.constant dense<0.000000e+00> : vector<4x128xf32>
    %328 = tpu.matmul %292, %10, %cst_93 {dimension_numbers = #tpu.dot_dimension_numbers<[1], [0], [0], [1], [0, 0, 1, 1], [], []>} : vector<4x32xf32>, vector<32x128xf32>, vector<4x128xf32> -> vector<4x128xf32>
    %329 = arith.addf %327, %328 : vector<4x128xf32>
    %330 = vector.extract_strided_slice %329 {offsets = [0, 0], sizes = [4, 32], strides = [1, 1]} : vector<4x128xf32> to vector<4x32xf32>
    %331 = arith.negf %330 : vector<4x32xf32>
    %332 = math.exp %331 : vector<4x32xf32>
    %cst_94 = arith.constant 1.000000e+00 : f32
    %333 = vector.broadcast %cst_94 : f32 to vector<4x32xf32>
    %334 = arith.addf %333, %332 : vector<4x32xf32>
    %335 = arith.divf %333, %334 : vector<4x32xf32>
    %336 = vector.extract_strided_slice %329 {offsets = [0, 32], sizes = [4, 32], strides = [1, 1]} : vector<4x128xf32> to vector<4x32xf32>
    %337 = arith.negf %336 : vector<4x32xf32>
    %338 = math.exp %337 : vector<4x32xf32>
    %cst_95 = arith.constant 1.000000e+00 : f32
    %339 = vector.broadcast %cst_95 : f32 to vector<4x32xf32>
    %340 = arith.addf %339, %338 : vector<4x32xf32>
    %341 = arith.divf %339, %340 : vector<4x32xf32>
    %342 = vector.extract_strided_slice %329 {offsets = [0, 64], sizes = [4, 32], strides = [1, 1]} : vector<4x128xf32> to vector<4x32xf32>
    %343 = math.tanh %342 : vector<4x32xf32>
    %344 = vector.extract_strided_slice %329 {offsets = [0, 96], sizes = [4, 32], strides = [1, 1]} : vector<4x128xf32> to vector<4x32xf32>
    %345 = arith.negf %344 : vector<4x32xf32>
    %346 = math.exp %345 : vector<4x32xf32>
    %cst_96 = arith.constant 1.000000e+00 : f32
    %347 = vector.broadcast %cst_96 : f32 to vector<4x32xf32>
    %348 = arith.addf %347, %346 : vector<4x32xf32>
    %349 = arith.divf %347, %348 : vector<4x32xf32>
    %350 = arith.mulf %341, %290 : vector<4x32xf32>
    %351 = arith.mulf %335, %343 : vector<4x32xf32>
    %352 = arith.addf %350, %351 : vector<4x32xf32>
    %353 = math.tanh %352 : vector<4x32xf32>
    %354 = arith.mulf %349, %353 : vector<4x32xf32>
    %c5_97 = arith.constant 5 : index
    %c0_98 = arith.constant 0 : index
    %c0_99 = arith.constant 0 : index
    %355 = vector.load %arg4[%c5_97, %c0_98, %c0_99] : memref<8x4x64xf32, #tpu.memory_space<vmem>>, vector<1x4x32xf32>
    %356 = vector.shape_cast %355 : vector<1x4x32xf32> to vector<4x32xf32>
    %357 = vector.shape_cast %354 : vector<4x32xf32> to vector<1x4x32xf32>
    tpu.vector_store %arg4[%c5_97, %c0_98, %c0_99], %357 {strides = array<i32>} : memref<8x4x64xf32, #tpu.memory_space<vmem>>, vector<1x4x32xf32>,
    %c8_100 = arith.constant 8 : index
    %c128_101 = arith.constant 128 : index
    %358 = vector.load %arg5[%c8_100, %c128_101] : memref<32x256xf32, #tpu.memory_space<vmem>>, vector<4x128xf32>
    %cst_102 = arith.constant dense<0.000000e+00> : vector<4x128xf32>
    %359 = tpu.matmul %323, %12, %cst_102 {dimension_numbers = #tpu.dot_dimension_numbers<[1], [0], [0], [1], [0, 0, 1, 1], [], []>} : vector<4x32xf32>, vector<32x128xf32>, vector<4x128xf32> -> vector<4x128xf32>
    %360 = arith.addf %358, %359 : vector<4x128xf32>
    %361 = vector.extract_strided_slice %360 {offsets = [0, 0], sizes = [4, 32], strides = [1, 1]} : vector<4x128xf32> to vector<4x32xf32>
    %362 = arith.negf %361 : vector<4x32xf32>
    %363 = math.exp %362 : vector<4x32xf32>
    %cst_103 = arith.constant 1.000000e+00 : f32
    %364 = vector.broadcast %cst_103 : f32 to vector<4x32xf32>
    %365 = arith.addf %364, %363 : vector<4x32xf32>
    %366 = arith.divf %364, %365 : vector<4x32xf32>
    %367 = vector.extract_strided_slice %360 {offsets = [0, 32], sizes = [4, 32], strides = [1, 1]} : vector<4x128xf32> to vector<4x32xf32>
    %368 = arith.negf %367 : vector<4x32xf32>
    %369 = math.exp %368 : vector<4x32xf32>
    %cst_104 = arith.constant 1.000000e+00 : f32
    %370 = vector.broadcast %cst_104 : f32 to vector<4x32xf32>
    %371 = arith.addf %370, %369 : vector<4x32xf32>
    %372 = arith.divf %370, %371 : vector<4x32xf32>
    %373 = vector.extract_strided_slice %360 {offsets = [0, 64], sizes = [4, 32], strides = [1, 1]} : vector<4x128xf32> to vector<4x32xf32>
    %374 = math.tanh %373 : vector<4x32xf32>
    %375 = vector.extract_strided_slice %360 {offsets = [0, 96], sizes = [4, 32], strides = [1, 1]} : vector<4x128xf32> to vector<4x32xf32>
    %376 = arith.negf %375 : vector<4x32xf32>
    %377 = math.exp %376 : vector<4x32xf32>
    %cst_105 = arith.constant 1.000000e+00 : f32
    %378 = vector.broadcast %cst_105 : f32 to vector<4x32xf32>
    %379 = arith.addf %378, %377 : vector<4x32xf32>
    %380 = arith.divf %378, %379 : vector<4x32xf32>
    %381 = arith.mulf %372, %321 : vector<4x32xf32>
    %382 = arith.mulf %366, %374 : vector<4x32xf32>
    %383 = arith.addf %381, %382 : vector<4x32xf32>
    %384 = math.tanh %383 : vector<4x32xf32>
    %385 = arith.mulf %380, %384 : vector<4x32xf32>
    %c2_106 = arith.constant 2 : index
    %c0_107 = arith.constant 0 : index
    %c32_108 = arith.constant 32 : index
    %386 = vector.load %arg4[%c2_106, %c0_107, %c32_108] : memref<8x4x64xf32, #tpu.memory_space<vmem>>, vector<1x4x32xf32>
    %387 = vector.shape_cast %386 : vector<1x4x32xf32> to vector<4x32xf32>
    %388 = vector.shape_cast %385 : vector<4x32xf32> to vector<1x4x32xf32>
    tpu.vector_store %arg4[%c2_106, %c0_107, %c32_108], %388 {strides = array<i32>} : memref<8x4x64xf32, #tpu.memory_space<vmem>>, vector<1x4x32xf32>,
    %c24_109 = arith.constant 24 : index
    %c0_110 = arith.constant 0 : index
    %389 = vector.load %arg5[%c24_109, %c0_110] : memref<32x256xf32, #tpu.memory_space<vmem>>, vector<4x128xf32>
    %cst_111 = arith.constant dense<0.000000e+00> : vector<4x128xf32>
    %390 = tpu.matmul %354, %10, %cst_111 {dimension_numbers = #tpu.dot_dimension_numbers<[1], [0], [0], [1], [0, 0, 1, 1], [], []>} : vector<4x32xf32>, vector<32x128xf32>, vector<4x128xf32> -> vector<4x128xf32>
    %391 = arith.addf %389, %390 : vector<4x128xf32>
    %392 = vector.extract_strided_slice %391 {offsets = [0, 0], sizes = [4, 32], strides = [1, 1]} : vector<4x128xf32> to vector<4x32xf32>
    %393 = arith.negf %392 : vector<4x32xf32>
    %394 = math.exp %393 : vector<4x32xf32>
    %cst_112 = arith.constant 1.000000e+00 : f32
    %395 = vector.broadcast %cst_112 : f32 to vector<4x32xf32>
    %396 = arith.addf %395, %394 : vector<4x32xf32>
    %397 = arith.divf %395, %396 : vector<4x32xf32>
    %398 = vector.extract_strided_slice %391 {offsets = [0, 32], sizes = [4, 32], strides = [1, 1]} : vector<4x128xf32> to vector<4x32xf32>
    %399 = arith.negf %398 : vector<4x32xf32>
    %400 = math.exp %399 : vector<4x32xf32>
    %cst_113 = arith.constant 1.000000e+00 : f32
    %401 = vector.broadcast %cst_113 : f32 to vector<4x32xf32>
    %402 = arith.addf %401, %400 : vector<4x32xf32>
    %403 = arith.divf %401, %402 : vector<4x32xf32>
    %404 = vector.extract_strided_slice %391 {offsets = [0, 64], sizes = [4, 32], strides = [1, 1]} : vector<4x128xf32> to vector<4x32xf32>
    %405 = math.tanh %404 : vector<4x32xf32>
    %406 = vector.extract_strided_slice %391 {offsets = [0, 96], sizes = [4, 32], strides = [1, 1]} : vector<4x128xf32> to vector<4x32xf32>
    %407 = arith.negf %406 : vector<4x32xf32>
    %408 = math.exp %407 : vector<4x32xf32>
    %cst_114 = arith.constant 1.000000e+00 : f32
    %409 = vector.broadcast %cst_114 : f32 to vector<4x32xf32>
    %410 = arith.addf %409, %408 : vector<4x32xf32>
    %411 = arith.divf %409, %410 : vector<4x32xf32>
    %412 = arith.mulf %403, %352 : vector<4x32xf32>
    %413 = arith.mulf %397, %405 : vector<4x32xf32>
    %414 = arith.addf %412, %413 : vector<4x32xf32>
    %415 = math.tanh %414 : vector<4x32xf32>
    %416 = arith.mulf %411, %415 : vector<4x32xf32>
    %c6_115 = arith.constant 6 : index
    %c0_116 = arith.constant 0 : index
    %c0_117 = arith.constant 0 : index
    %417 = vector.load %arg4[%c6_115, %c0_116, %c0_117] : memref<8x4x64xf32, #tpu.memory_space<vmem>>, vector<1x4x32xf32>
    %418 = vector.shape_cast %417 : vector<1x4x32xf32> to vector<4x32xf32>
    %419 = vector.shape_cast %416 : vector<4x32xf32> to vector<1x4x32xf32>
    tpu.vector_store %arg4[%c6_115, %c0_116, %c0_117], %419 {strides = array<i32>} : memref<8x4x64xf32, #tpu.memory_space<vmem>>, vector<1x4x32xf32>,
    %c4_118 = arith.constant 4 : index
    %c128_119 = arith.constant 128 : index
    %420 = vector.load %arg5[%c4_118, %c128_119] : memref<32x256xf32, #tpu.memory_space<vmem>>, vector<4x128xf32>
    %cst_120 = arith.constant dense<0.000000e+00> : vector<4x128xf32>
    %421 = tpu.matmul %385, %12, %cst_120 {dimension_numbers = #tpu.dot_dimension_numbers<[1], [0], [0], [1], [0, 0, 1, 1], [], []>} : vector<4x32xf32>, vector<32x128xf32>, vector<4x128xf32> -> vector<4x128xf32>
    %422 = arith.addf %420, %421 : vector<4x128xf32>
    %423 = vector.extract_strided_slice %422 {offsets = [0, 0], sizes = [4, 32], strides = [1, 1]} : vector<4x128xf32> to vector<4x32xf32>
    %424 = arith.negf %423 : vector<4x32xf32>
    %425 = math.exp %424 : vector<4x32xf32>
    %cst_121 = arith.constant 1.000000e+00 : f32
    %426 = vector.broadcast %cst_121 : f32 to vector<4x32xf32>
    %427 = arith.addf %426, %425 : vector<4x32xf32>
    %428 = arith.divf %426, %427 : vector<4x32xf32>
    %429 = vector.extract_strided_slice %422 {offsets = [0, 32], sizes = [4, 32], strides = [1, 1]} : vector<4x128xf32> to vector<4x32xf32>
    %430 = arith.negf %429 : vector<4x32xf32>
    %431 = math.exp %430 : vector<4x32xf32>
    %cst_122 = arith.constant 1.000000e+00 : f32
    %432 = vector.broadcast %cst_122 : f32 to vector<4x32xf32>
    %433 = arith.addf %432, %431 : vector<4x32xf32>
    %434 = arith.divf %432, %433 : vector<4x32xf32>
    %435 = vector.extract_strided_slice %422 {offsets = [0, 64], sizes = [4, 32], strides = [1, 1]} : vector<4x128xf32> to vector<4x32xf32>
    %436 = math.tanh %435 : vector<4x32xf32>
    %437 = vector.extract_strided_slice %422 {offsets = [0, 96], sizes = [4, 32], strides = [1, 1]} : vector<4x128xf32> to vector<4x32xf32>
    %438 = arith.negf %437 : vector<4x32xf32>
    %439 = math.exp %438 : vector<4x32xf32>
    %cst_123 = arith.constant 1.000000e+00 : f32
    %440 = vector.broadcast %cst_123 : f32 to vector<4x32xf32>
    %441 = arith.addf %440, %439 : vector<4x32xf32>
    %442 = arith.divf %440, %441 : vector<4x32xf32>
    %443 = arith.mulf %434, %383 : vector<4x32xf32>
    %444 = arith.mulf %428, %436 : vector<4x32xf32>
    %445 = arith.addf %443, %444 : vector<4x32xf32>
    %446 = math.tanh %445 : vector<4x32xf32>
    %447 = arith.mulf %442, %446 : vector<4x32xf32>
    %c1_124 = arith.constant 1 : index
    %c0_125 = arith.constant 0 : index
    %c32_126 = arith.constant 32 : index
    %448 = vector.load %arg4[%c1_124, %c0_125, %c32_126] : memref<8x4x64xf32, #tpu.memory_space<vmem>>, vector<1x4x32xf32>
    %449 = vector.shape_cast %448 : vector<1x4x32xf32> to vector<4x32xf32>
    %450 = vector.shape_cast %447 : vector<4x32xf32> to vector<1x4x32xf32>
    tpu.vector_store %arg4[%c1_124, %c0_125, %c32_126], %450 {strides = array<i32>} : memref<8x4x64xf32, #tpu.memory_space<vmem>>, vector<1x4x32xf32>,
    %c28_127 = arith.constant 28 : index
    %c0_128 = arith.constant 0 : index
    %451 = vector.load %arg5[%c28_127, %c0_128] : memref<32x256xf32, #tpu.memory_space<vmem>>, vector<4x128xf32>
    %cst_129 = arith.constant dense<0.000000e+00> : vector<4x128xf32>
    %452 = tpu.matmul %416, %10, %cst_129 {dimension_numbers = #tpu.dot_dimension_numbers<[1], [0], [0], [1], [0, 0, 1, 1], [], []>} : vector<4x32xf32>, vector<32x128xf32>, vector<4x128xf32> -> vector<4x128xf32>
    %453 = arith.addf %451, %452 : vector<4x128xf32>
    %454 = vector.extract_strided_slice %453 {offsets = [0, 0], sizes = [4, 32], strides = [1, 1]} : vector<4x128xf32> to vector<4x32xf32>
    %455 = arith.negf %454 : vector<4x32xf32>
    %456 = math.exp %455 : vector<4x32xf32>
    %cst_130 = arith.constant 1.000000e+00 : f32
    %457 = vector.broadcast %cst_130 : f32 to vector<4x32xf32>
    %458 = arith.addf %457, %456 : vector<4x32xf32>
    %459 = arith.divf %457, %458 : vector<4x32xf32>
    %460 = vector.extract_strided_slice %453 {offsets = [0, 32], sizes = [4, 32], strides = [1, 1]} : vector<4x128xf32> to vector<4x32xf32>
    %461 = arith.negf %460 : vector<4x32xf32>
    %462 = math.exp %461 : vector<4x32xf32>
    %cst_131 = arith.constant 1.000000e+00 : f32
    %463 = vector.broadcast %cst_131 : f32 to vector<4x32xf32>
    %464 = arith.addf %463, %462 : vector<4x32xf32>
    %465 = arith.divf %463, %464 : vector<4x32xf32>
    %466 = vector.extract_strided_slice %453 {offsets = [0, 64], sizes = [4, 32], strides = [1, 1]} : vector<4x128xf32> to vector<4x32xf32>
    %467 = math.tanh %466 : vector<4x32xf32>
    %468 = vector.extract_strided_slice %453 {offsets = [0, 96], sizes = [4, 32], strides = [1, 1]} : vector<4x128xf32> to vector<4x32xf32>
    %469 = arith.negf %468 : vector<4x32xf32>
    %470 = math.exp %469 : vector<4x32xf32>
    %cst_132 = arith.constant 1.000000e+00 : f32
    %471 = vector.broadcast %cst_132 : f32 to vector<4x32xf32>
    %472 = arith.addf %471, %470 : vector<4x32xf32>
    %473 = arith.divf %471, %472 : vector<4x32xf32>
    %474 = arith.mulf %465, %414 : vector<4x32xf32>
    %475 = arith.mulf %459, %467 : vector<4x32xf32>
    %476 = arith.addf %474, %475 : vector<4x32xf32>
    %477 = math.tanh %476 : vector<4x32xf32>
    %478 = arith.mulf %473, %477 : vector<4x32xf32>
    %c7_133 = arith.constant 7 : index
    %c0_134 = arith.constant 0 : index
    %c0_135 = arith.constant 0 : index
    %479 = vector.load %arg4[%c7_133, %c0_134, %c0_135] : memref<8x4x64xf32, #tpu.memory_space<vmem>>, vector<1x4x32xf32>
    %480 = vector.shape_cast %479 : vector<1x4x32xf32> to vector<4x32xf32>
    %481 = vector.shape_cast %478 : vector<4x32xf32> to vector<1x4x32xf32>
    tpu.vector_store %arg4[%c7_133, %c0_134, %c0_135], %481 {strides = array<i32>} : memref<8x4x64xf32, #tpu.memory_space<vmem>>, vector<1x4x32xf32>,
    %c0_136 = arith.constant 0 : index
    %c128_137 = arith.constant 128 : index
    %482 = vector.load %arg5[%c0_136, %c128_137] : memref<32x256xf32, #tpu.memory_space<vmem>>, vector<4x128xf32>
    %cst_138 = arith.constant dense<0.000000e+00> : vector<4x128xf32>
    %483 = tpu.matmul %447, %12, %cst_138 {dimension_numbers = #tpu.dot_dimension_numbers<[1], [0], [0], [1], [0, 0, 1, 1], [], []>} : vector<4x32xf32>, vector<32x128xf32>, vector<4x128xf32> -> vector<4x128xf32>
    %484 = arith.addf %482, %483 : vector<4x128xf32>
    %485 = vector.extract_strided_slice %484 {offsets = [0, 0], sizes = [4, 32], strides = [1, 1]} : vector<4x128xf32> to vector<4x32xf32>
    %486 = arith.negf %485 : vector<4x32xf32>
    %487 = math.exp %486 : vector<4x32xf32>
    %cst_139 = arith.constant 1.000000e+00 : f32
    %488 = vector.broadcast %cst_139 : f32 to vector<4x32xf32>
    %489 = arith.addf %488, %487 : vector<4x32xf32>
    %490 = arith.divf %488, %489 : vector<4x32xf32>
    %491 = vector.extract_strided_slice %484 {offsets = [0, 32], sizes = [4, 32], strides = [1, 1]} : vector<4x128xf32> to vector<4x32xf32>
    %492 = arith.negf %491 : vector<4x32xf32>
    %493 = math.exp %492 : vector<4x32xf32>
    %cst_140 = arith.constant 1.000000e+00 : f32
    %494 = vector.broadcast %cst_140 : f32 to vector<4x32xf32>
    %495 = arith.addf %494, %493 : vector<4x32xf32>
    %496 = arith.divf %494, %495 : vector<4x32xf32>
    %497 = vector.extract_strided_slice %484 {offsets = [0, 64], sizes = [4, 32], strides = [1, 1]} : vector<4x128xf32> to vector<4x32xf32>
    %498 = math.tanh %497 : vector<4x32xf32>
    %499 = vector.extract_strided_slice %484 {offsets = [0, 96], sizes = [4, 32], strides = [1, 1]} : vector<4x128xf32> to vector<4x32xf32>
    %500 = arith.negf %499 : vector<4x32xf32>
    %501 = math.exp %500 : vector<4x32xf32>
    %cst_141 = arith.constant 1.000000e+00 : f32
    %502 = vector.broadcast %cst_141 : f32 to vector<4x32xf32>
    %503 = arith.addf %502, %501 : vector<4x32xf32>
    %504 = arith.divf %502, %503 : vector<4x32xf32>
    %505 = arith.mulf %496, %445 : vector<4x32xf32>
    %506 = arith.mulf %490, %498 : vector<4x32xf32>
    %507 = arith.addf %505, %506 : vector<4x32xf32>
    %508 = math.tanh %507 : vector<4x32xf32>
    %509 = arith.mulf %504, %508 : vector<4x32xf32>
    %c0_142 = arith.constant 0 : index
    %c0_143 = arith.constant 0 : index
    %c32_144 = arith.constant 32 : index
    %510 = vector.load %arg4[%c0_142, %c0_143, %c32_144] : memref<8x4x64xf32, #tpu.memory_space<vmem>>, vector<1x4x32xf32>
    %511 = vector.shape_cast %510 : vector<1x4x32xf32> to vector<4x32xf32>
    %512 = vector.shape_cast %509 : vector<4x32xf32> to vector<1x4x32xf32>
    tpu.vector_store %arg4[%c0_142, %c0_143, %c32_144], %512 {strides = array<i32>} : memref<8x4x64xf32, #tpu.memory_space<vmem>>, vector<1x4x32xf32>,
    return
  }
}

</mosaic_0001>

<llo_original>
// kernel: tpu_custom_call.1
$region0: #{tpu_custom_call.1}
  #allocation0 [shape = 'u32[]', space=smem, size = 0x4, offset = 0x4, fixed_abs, tag = 'smem constant byte address 0x4 - core index']
  #allocation1 [shape = 'u32[72,128]{1,0:T(1,128)}', space=vmem, size = 0x9000, scoped, tag = 'internal scratch']
  #allocation2 [shape = 'f32[32,256]{1,0:T(8,128)}', space=vmem, size = 0x8000, scoped, tag = 'scratch operand']
  %s0 = inlined_call_operand.vmem [shape: f32[32,1], index: 0, kind: input, shape index: {}]
  %s1 = inlined_call_operand.vmem [shape: f32[1,256], index: 1, kind: input, shape index: {}]
  %s2 = inlined_call_operand.hbm [shape: f32[2,32,128], index: 2, kind: input, shape index: {}]
  %s3 = inlined_call_operand.vmem [shape: f32[1,256], index: 3, kind: input, shape index: {}]
  %s4 = inlined_call_operand.hbm [shape: f32[8,4,64], index: 4, kind: output, shape index: {}]
  %s5 = sld [smem:[#allocation0]]
  $region30: #{tpu_custom_call.1} parent=0
    _
  %s7 = ssub.s32 1, %s5
  %s8 = scalar_select 0, %s7, %s5
  $region1: #{tpu_custom_call.1} parent=0
    #allocation3 [shape = 'u8[32768]{0}', space=vmem, size = 0x8000, scoped, tag = 'input window, operand 2, single buffered']
    #allocation4 [shape = 's32[1]{0}', space=sflag, size = 0x4, scoped, tag = 'scoped memory for tpu_custom_call.1']
    #allocation5 [shape = 's32[1]{0}', space=sflag, size = 0x4, scoped, tag = 'scoped memory for tpu_custom_call.1']
    #allocation6 [shape = 'u8[16384]{0}', space=vmem, size = 0x4000, scoped, tag = 'output window, operand 0, single buffered']
    %9 = vsyncpa [#allocation4], 0
    %10 = vsyncpa [#allocation5], 0
    // Predicated region
    $region2: #{tpu_custom_call.1} parent=1 // pred_check
      _
    $region3: #{tpu_custom_call.1} parent=1 // pred_check_branch
      %12 = sbr.rel (0) target = $region5
    $region4: #{tpu_custom_call.1} parent=1 // pred_region
      _
    $region5: #{tpu_custom_call.1} parent=1 // pred_fallthru
      _
    // Predicated region
    $region6: #{tpu_custom_call.1} parent=1 // pred_check
      _
    $region7: #{tpu_custom_call.1} parent=1 // pred_check_branch
      %14 = sbr.rel (0) target = $region9
    $region8: #{tpu_custom_call.1} parent=1 // pred_region
      _
    $region9: #{tpu_custom_call.1} parent=1 // pred_fallthru
      _
    // Predicated region
    $region10: #{tpu_custom_call.1} parent=1 // pred_check
      _
    $region11: #{tpu_custom_call.1} parent=1 // pred_check_branch
      %16 = sbr.rel (0) target = $region13
    $region12: #{tpu_custom_call.1} parent=1 // pred_region
      %18 = vsyncadd [#allocation4], 0
      %s19 = sshll.u32 %s2, 4
      %s20 = int_to_ptr.hbm [resolvable:$true] %s19
      %s21 = sshll.u32 [#allocation3], 4
      %s22 = int_to_ptr.vmem [resolvable:$true] %s21
      %27 = dma.hbm_to_vmem [thread:$0]  %s20, 1024, %s22, [#allocation4], 128, 128, 8
    $region13: #{tpu_custom_call.1} parent=1 // pred_fallthru
      _
    // Predicated region
    $region14: #{tpu_custom_call.1} parent=1 // pred_check
      _
    $region15: #{tpu_custom_call.1} parent=1 // pred_check_branch
      %29 = sbr.rel (0) target = $region17
    $region16: #{tpu_custom_call.1} parent=1 // pred_region
      _
    $region17: #{tpu_custom_call.1} parent=1 // pred_fallthru
      _
    // Predicated region
    $region18: #{tpu_custom_call.1} parent=1 // pred_check
      _
    $region19: #{tpu_custom_call.1} parent=1 // pred_check_branch
      %31 = sbr.rel (0) target = $region21
    $region20: #{tpu_custom_call.1} parent=1 // pred_region
      %33 = dma.done [#allocation4], 1024
    $region21: #{tpu_custom_call.1} parent=1 // pred_fallthru
      _
    %v34 = vld [vmem:[%s0] sm:$0xff]
    %v35 = vld [vmem:[%s0 + $0x8] sm:$0xff]
    %v36 = vld [vmem:[%s0 + $0x10] sm:$0xff]
    %v37 = vld [vmem:[%s0 + $0x18] sm:$0xff]
    %v38 = vld [vmem:[%s1] sm:$0x3]
    %40 = vset.pattern.permute.xlu0 0
    %41 = vperm.xlu0 %40, %v34
    %v42 = vpop.permute.xlu0 %41
    %45 = vset.pattern.permute.xlu0 0
    %46 = vperm.xlu0 %45, %v35
    %v47 = vpop.permute.xlu0 %46
    %50 = vset.pattern.permute.xlu0 0
    %51 = vperm.xlu0 %50, %v36
    %v52 = vpop.permute.xlu0 %51
    %55 = vset.pattern.permute.xlu0 0
    %56 = vperm.xlu0 %55, %v37
    %v57 = vpop.permute.xlu0 %56
    %v60 = vperm.slane %v38, 0
    %v61 = vperm.slane %v38, 1
    %v64 = vmul.f32 %v42, %v60
    %v65 = vmul.f32 %v42, %v61
    %v66 = vmul.f32 %v47, %v60
    %v67 = vmul.f32 %v47, %v61
    %v68 = vmul.f32 %v52, %v60
    %v69 = vmul.f32 %v52, %v61
    %v70 = vmul.f32 %v57, %v60
    %v71 = vmul.f32 %v57, %v61
    %v72 = vld [vmem:[%s3] sm:$0x3]
    %v74 = vperm.slane %v72, 0
    %v75 = vperm.slane %v72, 1
    %v78 = vadd.f32 %v64, %v74
    %v79 = vadd.f32 %v65, %v75
    %v80 = vadd.f32 %v66, %v74
    %v81 = vadd.f32 %v67, %v75
    %v82 = vadd.f32 %v68, %v74
    %v83 = vadd.f32 %v69, %v75
    %v84 = vadd.f32 %v70, %v74
    %v85 = vadd.f32 %v71, %v75
    %86 = vst [vmem:[#allocation2] sm:$0xff] %v78
    %87 = vst [vmem:[#allocation2 + $0x8] sm:$0xff] %v79
    %88 = vst [vmem:[#allocation2 + $0x10] sm:$0xff] %v80
    %89 = vst [vmem:[#allocation2 + $0x18] sm:$0xff] %v81
    %90 = vst [vmem:[#allocation2 + $0x20] sm:$0xff] %v82
    %91 = vst [vmem:[#allocation2 + $0x28] sm:$0xff] %v83
    %92 = vst [vmem:[#allocation2 + $0x30] sm:$0xff] %v84
    %93 = vst [vmem:[#allocation2 + $0x38] sm:$0xff] %v85
    %v94 = vld [vmem:[#allocation3] sm:$0xff]
    %v95 = vld [vmem:[#allocation3 + $0x8] sm:$0xff]
    %v96 = vld [vmem:[#allocation3 + $0x10] sm:$0xff]
    %v97 = vld [vmem:[#allocation3 + $0x18] sm:$0xff]
    %s98 = scalar_lea.vmem [#allocation3], 32
    %v99 = vld [vmem:[%s98] sm:$0xff]
    %v100 = vld [vmem:[%s98 + $0x8] sm:$0xff]
    %v101 = vld [vmem:[%s98 + $0x10] sm:$0xff]
    %v102 = vld [vmem:[%s98 + $0x18] sm:$0xff]
    %v103 = vld [vmem:[#allocation2] sm:$0xf]
    %vm104 = vcmask 261120
    %v106 = vsel %vm104, 0.0, 0
    %108 = vmatpush.msra.mxu0 0.0
    %109 = vmatpush.msra.mxu0 0.0
    %110 = vmatpush.msra.mxu0 0.0
    %111 = vmatpush.msra.mxu0 0.0
    %112 = vmatpush.msra.mxu0 0.0
    %113 = vmatpush.msra.mxu0 0.0
    %114 = vmatpush.msra.mxu0 0.0
    %115 = vmatpush.msra.mxu0 0.0
    %116 = vmatpush.msra.mxu0 0.0
    %117 = vmatpush.msra.mxu0 0.0
    %118 = vmatpush.msra.mxu0 0.0
    %119 = vmatpush.msra.mxu0 0.0
    %120 = vmatpush.msra.mxu0 %v97
    %121 = vmatpush.msra.mxu0 %v96
    %122 = vmatpush.msra.mxu0 %v95
    %123 = vmatpush.msra.mxu0 %v94
    %124 = vmatmul.f32.gmra.mxu0 %v106
    %v125 = vpop.f32.mrf.mxu0
    %v126 = vadd.f32 0.0, %v125
    %127 = vdwg.mxu0
    %v128 = vadd.f32 %v103, %v126
    %v129 = vxor.u32 %v128, 2147483648
    %v130 = vmul.f32 %v129, 1.442695
    %v131 = vpow.pop %v130
    %v132 = vadd.f32 %v131, 1.0
    %v133 = vrcp.pop %v132
    %v134 = vmul.f32 %v132, %v133
    %v135 = vsub.f32 1.0, %v134
    %v136 = vmul.f32 %v133, %v135
    %v137 = vadd.f32 %v133, %v136
    %vm138 = vweird.f32 %v132
    %vm139 = vweird.f32 %v133
    %vm140 = vmor %vm138, %vm139
    %v141 = vsel %vm140, %v133, %v137
    %v142 = vand.u32 2147483647, %v132
    %vm143 = vcmp.eq.f32.partialorder %v142, 8.507059e+37
    %v144 = vand.u32 %v132, 2147483648
    %v145 = vor.u32 1.1754944e-38, %v144
    %v146 = vsel %vm143, %v145, %v141
    %v147 = vmul.f32 1.0, %v146
    %v148 = vtanh.pop %v128
    %v149 = vmul.f32 %v147, 0.0
    %151 = vrot.lane.b32.xlu0 %v148, 64
    %v152 = vpop.permute.xlu0 %151
    %v154 = vmul.f32 %v147, %v152
    %156 = vrot.lane.b32.xlu0 %v154, 32
    %v157 = vpop.permute.xlu0 %156
    %v159 = vadd.f32 %v149, %v157
    %v160 = vtanh.pop %v159
    %162 = vrot.lane.b32.xlu0 %v160, 64
    %v163 = vpop.permute.xlu0 %162
    %v165 = vmul.f32 %v147, %v163
    %167 = vrot.lane.b32.xlu0 %v165, 32
    %v168 = vpop.permute.xlu0 %167
    %vm170 = vcmask 257024
    %171 = vst.msk [vmem:[#allocation6] sm:$0xf] %vm170, %v168
    %v172 = vld [vmem:[#allocation2 + $0x38] sm:$0xf0]
    %173 = vmatpush.msra.mxu0 0.0
    %174 = vmatpush.msra.mxu0 0.0
    %175 = vmatpush.msra.mxu0 0.0
    %176 = vmatpush.msra.mxu0 0.0
    %177 = vmatpush.msra.mxu0 0.0
    %178 = vmatpush.msra.mxu0 0.0
    %179 = vmatpush.msra.mxu0 0.0
    %180 = vmatpush.msra.mxu0 0.0
    %181 = vmatpush.msra.mxu0 0.0
    %182 = vmatpush.msra.mxu0 0.0
    %183 = vmatpush.msra.mxu0 0.0
    %184 = vmatpush.msra.mxu0 0.0
    %185 = vmatpush.msra.mxu0 %v102
    %186 = vmatpush.msra.mxu0 %v101
    %187 = vmatpush.msra.mxu0 %v100
    %188 = vmatpush.msra.mxu0 %v99
    %189 = vmatmul.f32.gmra.mxu0 %v106
    %v190 = vpop.f32.mrf.mxu0
    %v191 = vadd.f32 0.0, %v190
    %192 = vdwg.mxu0
    %v194 = vrot.slane %v191, 4
    %v196 = vadd.f32 %v172, %v194
    %v197 = vxor.u32 %v196, 2147483648
    %v198 = vmul.f32 %v197, 1.442695
    %v199 = vpow.pop %v198
    %v200 = vadd.f32 %v199, 1.0
    %v201 = vrcp.pop %v200
    %v202 = vmul.f32 %v200, %v201
    %v203 = vsub.f32 1.0, %v202
    %v204 = vmul.f32 %v201, %v203
    %v205 = vadd.f32 %v201, %v204
    %vm206 = vweird.f32 %v200
    %vm207 = vweird.f32 %v201
    %vm208 = vmor %vm206, %vm207
    %v209 = vsel %vm208, %v201, %v205
    %v210 = vand.u32 2147483647, %v200
    %vm211 = vcmp.eq.f32.partialorder %v210, 8.507059e+37
    %v212 = vand.u32 %v200, 2147483648
    %v213 = vor.u32 1.1754944e-38, %v212
    %v214 = vsel %vm211, %v213, %v209
    %v215 = vmul.f32 1.0, %v214
    %v216 = vtanh.pop %v196
    %v217 = vmul.f32 %v215, 0.0
    %219 = vrot.lane.b32.xlu0 %v216, 64
    %v220 = vpop.permute.xlu0 %219
    %v222 = vmul.f32 %v215, %v220
    %224 = vrot.lane.b32.xlu0 %v222, 32
    %v225 = vpop.permute.xlu0 %224
    %v227 = vadd.f32 %v217, %v225
    %v228 = vtanh.pop %v227
    %230 = vrot.lane.b32.xlu0 %v228, 64
    %v231 = vpop.permute.xlu0 %230
    %v233 = vmul.f32 %v215, %v231
    %235 = vrot.lane.b32.xlu0 %v233, 64
    %v236 = vpop.permute.xlu0 %235
    %s238 = scalar_lea.vmem [#allocation6], 28
    %vm239 = vcmask 523524
    %240 = vst.msk [vmem:[%s238 - $0x4] sm:$0xf0] %vm239, %v236
    %v241 = vld [vmem:[#allocation2] sm:$0xf0]
    %v242 = vsel %vm104, %v168, 0
    %244 = vmatpush.msra.mxu0 0.0
    %245 = vmatpush.msra.mxu0 0.0
    %246 = vmatpush.msra.mxu0 0.0
    %247 = vmatpush.msra.mxu0 0.0
    %248 = vmatpush.msra.mxu0 0.0
    %249 = vmatpush.msra.mxu0 0.0
    %250 = vmatpush.msra.mxu0 0.0
    %251 = vmatpush.msra.mxu0 0.0
    %252 = vmatpush.msra.mxu0 0.0
    %253 = vmatpush.msra.mxu0 0.0
    %254 = vmatpush.msra.mxu0 0.0
    %255 = vmatpush.msra.mxu0 0.0
    %256 = vmatpush.msra.mxu0 %v97
    %257 = vmatpush.msra.mxu0 %v96
    %258 = vmatpush.msra.mxu0 %v95
    %259 = vmatpush.msra.mxu0 %v94
    %260 = vmatmul.f32.gmra.mxu0 %v242
    %v261 = vpop.f32.mrf.mxu0
    %v262 = vadd.f32 0.0, %v261
    %263 = vdwg.mxu0
    %v265 = vrot.slane %v262, 4
    %v267 = vadd.f32 %v241, %v265
    %v268 = vxor.u32 %v267, 2147483648
    %v269 = vmul.f32 %v268, 1.442695
    %v270 = vpow.pop %v269
    %v271 = vadd.f32 %v270, 1.0
    %v272 = vrcp.pop %v271
    %v273 = vmul.f32 %v271, %v272
    %v274 = vsub.f32 1.0, %v273
    %v275 = vmul.f32 %v272, %v274
    %v276 = vadd.f32 %v272, %v275
    %vm277 = vweird.f32 %v271
    %vm278 = vweird.f32 %v272
    %vm279 = vmor %vm277, %vm278
    %v280 = vsel %vm279, %v272, %v276
    %v281 = vand.u32 2147483647, %v271
    %vm282 = vcmp.eq.f32.partialorder %v281, 8.507059e+37
    %v283 = vand.u32 %v271, 2147483648
    %v284 = vor.u32 1.1754944e-38, %v283
    %v285 = vsel %vm282, %v284, %v280
    %v286 = vmul.f32 1.0, %v285
    %v287 = vtanh.pop %v267
    %v289 = vrot.slane %v159, 4
    %v291 = vmul.f32 %v286, %v289
    %293 = vrot.lane.b32.xlu0 %v287, 64
    %v294 = vpop.permute.xlu0 %293
    %v296 = vmul.f32 %v286, %v294
    %298 = vrot.lane.b32.xlu0 %v296, 32
    %v299 = vpop.permute.xlu0 %298
    %v301 = vadd.f32 %v291, %v299
    %v302 = vtanh.pop %v301
    %304 = vrot.lane.b32.xlu0 %v302, 64
    %v305 = vpop.permute.xlu0 %304
    %v307 = vmul.f32 %v286, %v305
    %309 = vrot.lane.b32.xlu0 %v307, 32
    %v310 = vpop.permute.xlu0 %309
    %s312 = scalar_lea.vmem [#allocation6], 4
    %vm313 = vcmask 261124
    %314 = vst.msk [vmem:[%s312 - $0x4] sm:$0xf0] %vm313, %v310
    %v315 = vld [vmem:[#allocation2 + $0x38] sm:$0xf]
    %v316 = vrot.slane %v233, 4
    %317 = vrot.lane.b32.xlu0 %v316, 32
    %v318 = vpop.permute.xlu0 %317
    %v319 = vsel %vm104, %v318, 0
    %321 = vmatpush.msra.mxu0 0.0
    %322 = vmatpush.msra.mxu0 0.0
    %323 = vmatpush.msra.mxu0 0.0
    %324 = vmatpush.msra.mxu0 0.0
    %325 = vmatpush.msra.mxu0 0.0
    %326 = vmatpush.msra.mxu0 0.0
    %327 = vmatpush.msra.mxu0 0.0
    %328 = vmatpush.msra.mxu0 0.0
    %329 = vmatpush.msra.mxu0 0.0
    %330 = vmatpush.msra.mxu0 0.0
    %331 = vmatpush.msra.mxu0 0.0
    %332 = vmatpush.msra.mxu0 0.0
    %333 = vmatpush.msra.mxu0 %v102
    %334 = vmatpush.msra.mxu0 %v101
    %335 = vmatpush.msra.mxu0 %v100
    %336 = vmatpush.msra.mxu0 %v99
    %337 = vmatmul.f32.gmra.mxu0 %v319
    %v338 = vpop.f32.mrf.mxu0
    %v339 = vadd.f32 0.0, %v338
    %340 = vdwg.mxu0
    %v341 = vadd.f32 %v315, %v339
    %v342 = vxor.u32 %v341, 2147483648
    %v343 = vmul.f32 %v342, 1.442695
    %v344 = vpow.pop %v343
    %v345 = vadd.f32 %v344, 1.0
    %v346 = vrcp.pop %v345
    %v347 = vmul.f32 %v345, %v346
    %v348 = vsub.f32 1.0, %v347
    %v349 = vmul.f32 %v346, %v348
    %v350 = vadd.f32 %v346, %v349
    %vm351 = vweird.f32 %v345
    %vm352 = vweird.f32 %v346
    %vm353 = vmor %vm351, %vm352
    %v354 = vsel %vm353, %v346, %v350
    %v355 = vand.u32 2147483647, %v345
    %vm356 = vcmp.eq.f32.partialorder %v355, 8.507059e+37
    %v357 = vand.u32 %v345, 2147483648
    %v358 = vor.u32 1.1754944e-38, %v357
    %v359 = vsel %vm356, %v358, %v354
    %v360 = vmul.f32 1.0, %v359
    %v361 = vtanh.pop %v341
    %v363 = vrot.slane %v227, 4
    %v365 = vmul.f32 %v360, %v363
    %367 = vrot.lane.b32.xlu0 %v361, 64
    %v368 = vpop.permute.xlu0 %367
    %v370 = vmul.f32 %v360, %v368
    %372 = vrot.lane.b32.xlu0 %v370, 32
    %v373 = vpop.permute.xlu0 %372
    %v375 = vadd.f32 %v365, %v373
    %v376 = vtanh.pop %v375
    %378 = vrot.lane.b32.xlu0 %v376, 64
    %v379 = vpop.permute.xlu0 %378
    %v381 = vmul.f32 %v360, %v379
    %383 = vrot.lane.b32.xlu0 %v381, 64
    %v384 = vpop.permute.xlu0 %383
    %s386 = scalar_lea.vmem [#allocation6], 24
    %vm387 = vcmask 519424
    %388 = vst.msk [vmem:[%s386] sm:$0xf] %vm387, %v384
    %v389 = vld [vmem:[#allocation2 + $0x10] sm:$0xf]
    %v390 = vrot.slane %v307, 4
    %391 = vrot.lane.b32.xlu0 %v390, 32
    %v392 = vpop.permute.xlu0 %391
    %v393 = vsel %vm104, %v392, 0
    %395 = vmatpush.msra.mxu0 0.0
    %396 = vmatpush.msra.mxu0 0.0
    %397 = vmatpush.msra.mxu0 0.0
    %398 = vmatpush.msra.mxu0 0.0
    %399 = vmatpush.msra.mxu0 0.0
    %400 = vmatpush.msra.mxu0 0.0
    %401 = vmatpush.msra.mxu0 0.0
    %402 = vmatpush.msra.mxu0 0.0
    %403 = vmatpush.msra.mxu0 0.0
    %404 = vmatpush.msra.mxu0 0.0
    %405 = vmatpush.msra.mxu0 0.0
    %406 = vmatpush.msra.mxu0 0.0
    %407 = vmatpush.msra.mxu0 %v97
    %408 = vmatpush.msra.mxu0 %v96
    %409 = vmatpush.msra.mxu0 %v95
    %410 = vmatpush.msra.mxu0 %v94
    %411 = vmatmul.f32.gmra.mxu0 %v393
    %v412 = vpop.f32.mrf.mxu0
    %v413 = vadd.f32 0.0, %v412
    %414 = vdwg.mxu0
    %v415 = vadd.f32 %v389, %v413
    %v416 = vxor.u32 %v415, 2147483648
    %v417 = vmul.f32 %v416, 1.442695
    %v418 = vpow.pop %v417
    %v419 = vadd.f32 %v418, 1.0
    %v420 = vrcp.pop %v419
    %v421 = vmul.f32 %v419, %v420
    %v422 = vsub.f32 1.0, %v421
    %v423 = vmul.f32 %v420, %v422
    %v424 = vadd.f32 %v420, %v423
    %vm425 = vweird.f32 %v419
    %vm426 = vweird.f32 %v420
    %vm427 = vmor %vm425, %vm426
    %v428 = vsel %vm427, %v420, %v424
    %v429 = vand.u32 2147483647, %v419
    %vm430 = vcmp.eq.f32.partialorder %v429, 8.507059e+37
    %v431 = vand.u32 %v419, 2147483648
    %v432 = vor.u32 1.1754944e-38, %v431
    %v433 = vsel %vm430, %v432, %v428
    %v434 = vmul.f32 1.0, %v433
    %v435 = vtanh.pop %v415
    %v437 = vrot.slane %v301, 4
    %v439 = vmul.f32 %v434, %v437
    %441 = vrot.lane.b32.xlu0 %v435, 64
    %v442 = vpop.permute.xlu0 %441
    %v444 = vmul.f32 %v434, %v442
    %446 = vrot.lane.b32.xlu0 %v444, 32
    %v447 = vpop.permute.xlu0 %446
    %v449 = vadd.f32 %v439, %v447
    %v450 = vtanh.pop %v449
    %452 = vrot.lane.b32.xlu0 %v450, 64
    %v453 = vpop.permute.xlu0 %452
    %v455 = vmul.f32 %v434, %v453
    %457 = vrot.lane.b32.xlu0 %v455, 32
    %v458 = vpop.permute.xlu0 %457
    %s460 = scalar_lea.vmem [#allocation6], 8
    %461 = vst.msk [vmem:[%s460] sm:$0xf] %vm170, %v458
    %v462 = vld [vmem:[#allocation2 + $0x28] sm:$0xf0]
    %463 = vrot.lane.b32.xlu0 %v381, 32
    %v464 = vpop.permute.xlu0 %463
    %v465 = vsel %vm104, %v464, 0
    %467 = vmatpush.msra.mxu0 0.0
    %468 = vmatpush.msra.mxu0 0.0
    %469 = vmatpush.msra.mxu0 0.0
    %470 = vmatpush.msra.mxu0 0.0
    %471 = vmatpush.msra.mxu0 0.0
    %472 = vmatpush.msra.mxu0 0.0
    %473 = vmatpush.msra.mxu0 0.0
    %474 = vmatpush.msra.mxu0 0.0
    %475 = vmatpush.msra.mxu0 0.0
    %476 = vmatpush.msra.mxu0 0.0
    %477 = vmatpush.msra.mxu0 0.0
    %478 = vmatpush.msra.mxu0 0.0
    %479 = vmatpush.msra.mxu0 %v102
    %480 = vmatpush.msra.mxu0 %v101
    %481 = vmatpush.msra.mxu0 %v100
    %482 = vmatpush.msra.mxu0 %v99
    %483 = vmatmul.f32.gmra.mxu0 %v465
    %v484 = vpop.f32.mrf.mxu0
    %v485 = vadd.f32 0.0, %v484
    %486 = vdwg.mxu0
    %v488 = vrot.slane %v485, 4
    %v490 = vadd.f32 %v462, %v488
    %v491 = vxor.u32 %v490, 2147483648
    %v492 = vmul.f32 %v491, 1.442695
    %v493 = vpow.pop %v492
    %v494 = vadd.f32 %v493, 1.0
    %v495 = vrcp.pop %v494
    %v496 = vmul.f32 %v494, %v495
    %v497 = vsub.f32 1.0, %v496
    %v498 = vmul.f32 %v495, %v497
    %v499 = vadd.f32 %v495, %v498
    %vm500 = vweird.f32 %v494
    %vm501 = vweird.f32 %v495
    %vm502 = vmor %vm500, %vm501
    %v503 = vsel %vm502, %v495, %v499
    %v504 = vand.u32 2147483647, %v494
    %vm505 = vcmp.eq.f32.partialorder %v504, 8.507059e+37
    %v506 = vand.u32 %v494, 2147483648
    %v507 = vor.u32 1.1754944e-38, %v506
    %v508 = vsel %vm505, %v507, %v503
    %v509 = vmul.f32 1.0, %v508
    %v510 = vtanh.pop %v490
    %v512 = vrot.slane %v375, 4
    %v514 = vmul.f32 %v509, %v512
    %516 = vrot.lane.b32.xlu0 %v510, 64
    %v517 = vpop.permute.xlu0 %516
    %v519 = vmul.f32 %v509, %v517
    %521 = vrot.lane.b32.xlu0 %v519, 32
    %v522 = vpop.permute.xlu0 %521
    %v524 = vadd.f32 %v514, %v522
    %v525 = vtanh.pop %v524
    %527 = vrot.lane.b32.xlu0 %v525, 64
    %v528 = vpop.permute.xlu0 %527
    %v530 = vmul.f32 %v509, %v528
    %532 = vrot.lane.b32.xlu0 %v530, 64
    %v533 = vpop.permute.xlu0 %532
    %s535 = scalar_lea.vmem [#allocation6], 20
    %536 = vst.msk [vmem:[%s535 - $0x4] sm:$0xf0] %vm239, %v533
    %v537 = vld [vmem:[#allocation2 + $0x10] sm:$0xf0]
    %v538 = vsel %vm104, %v458, 0
    %540 = vmatpush.msra.mxu0 0.0
    %541 = vmatpush.msra.mxu0 0.0
    %542 = vmatpush.msra.mxu0 0.0
    %543 = vmatpush.msra.mxu0 0.0
    %544 = vmatpush.msra.mxu0 0.0
    %545 = vmatpush.msra.mxu0 0.0
    %546 = vmatpush.msra.mxu0 0.0
    %547 = vmatpush.msra.mxu0 0.0
    %548 = vmatpush.msra.mxu0 0.0
    %549 = vmatpush.msra.mxu0 0.0
    %550 = vmatpush.msra.mxu0 0.0
    %551 = vmatpush.msra.mxu0 0.0
    %552 = vmatpush.msra.mxu0 %v97
    %553 = vmatpush.msra.mxu0 %v96
    %554 = vmatpush.msra.mxu0 %v95
    %555 = vmatpush.msra.mxu0 %v94
    %556 = vmatmul.f32.gmra.mxu0 %v538
    %v557 = vpop.f32.mrf.mxu0
    %v558 = vadd.f32 0.0, %v557
    %559 = vdwg.mxu0
    %v561 = vrot.slane %v558, 4
    %v563 = vadd.f32 %v537, %v561
    %v564 = vxor.u32 %v563, 2147483648
    %v565 = vmul.f32 %v564, 1.442695
    %v566 = vpow.pop %v565
    %v567 = vadd.f32 %v566, 1.0
    %v568 = vrcp.pop %v567
    %v569 = vmul.f32 %v567, %v568
    %v570 = vsub.f32 1.0, %v569
    %v571 = vmul.f32 %v568, %v570
    %v572 = vadd.f32 %v568, %v571
    %vm573 = vweird.f32 %v567
    %vm574 = vweird.f32 %v568
    %vm575 = vmor %vm573, %vm574
    %v576 = vsel %vm575, %v568, %v572
    %v577 = vand.u32 2147483647, %v567
    %vm578 = vcmp.eq.f32.partialorder %v577, 8.507059e+37
    %v579 = vand.u32 %v567, 2147483648
    %v580 = vor.u32 1.1754944e-38, %v579
    %v581 = vsel %vm578, %v580, %v576
    %v582 = vmul.f32 1.0, %v581
    %v583 = vtanh.pop %v563
    %v585 = vrot.slane %v449, 4
    %v587 = vmul.f32 %v582, %v585
    %589 = vrot.lane.b32.xlu0 %v583, 64
    %v590 = vpop.permute.xlu0 %589
    %v592 = vmul.f32 %v582, %v590
    %594 = vrot.lane.b32.xlu0 %v592, 32
    %v595 = vpop.permute.xlu0 %594
    %v597 = vadd.f32 %v587, %v595
    %v598 = vtanh.pop %v597
    %600 = vrot.lane.b32.xlu0 %v598, 64
    %v601 = vpop.permute.xlu0 %600
    %v603 = vmul.f32 %v582, %v601
    %605 = vrot.lane.b32.xlu0 %v603, 32
    %v606 = vpop.permute.xlu0 %605
    %s608 = scalar_lea.vmem [#allocation6], 12
    %609 = vst.msk [vmem:[%s608 - $0x4] sm:$0xf0] %vm313, %v606
    %v610 = vld [vmem:[#allocation2 + $0x28] sm:$0xf]
    %v611 = vrot.slane %v530, 4
    %612 = vrot.lane.b32.xlu0 %v611, 32
    %v613 = vpop.permute.xlu0 %612
    %v614 = vsel %vm104, %v613, 0
    %616 = vmatpush.msra.mxu0 0.0
    %617 = vmatpush.msra.mxu0 0.0
    %618 = vmatpush.msra.mxu0 0.0
    %619 = vmatpush.msra.mxu0 0.0
    %620 = vmatpush.msra.mxu0 0.0
    %621 = vmatpush.msra.mxu0 0.0
    %622 = vmatpush.msra.mxu0 0.0
    %623 = vmatpush.msra.mxu0 0.0
    %624 = vmatpush.msra.mxu0 0.0
    %625 = vmatpush.msra.mxu0 0.0
    %626 = vmatpush.msra.mxu0 0.0
    %627 = vmatpush.msra.mxu0 0.0
    %628 = vmatpush.msra.mxu0 %v102
    %629 = vmatpush.msra.mxu0 %v101
    %630 = vmatpush.msra.mxu0 %v100
    %631 = vmatpush.msra.mxu0 %v99
    %632 = vmatmul.f32.gmra.mxu0 %v614
    %v633 = vpop.f32.mrf.mxu0
    %v634 = vadd.f32 0.0, %v633
    %635 = vdwg.mxu0
    %v636 = vadd.f32 %v610, %v634
    %v637 = vxor.u32 %v636, 2147483648
    %v638 = vmul.f32 %v637, 1.442695
    %v639 = vpow.pop %v638
    %v640 = vadd.f32 %v639, 1.0
    %v641 = vrcp.pop %v640
    %v642 = vmul.f32 %v640, %v641
    %v643 = vsub.f32 1.0, %v642
    %v644 = vmul.f32 %v641, %v643
    %v645 = vadd.f32 %v641, %v644
    %vm646 = vweird.f32 %v640
    %vm647 = vweird.f32 %v641
    %vm648 = vmor %vm646, %vm647
    %v649 = vsel %vm648, %v641, %v645
    %v650 = vand.u32 2147483647, %v640
    %vm651 = vcmp.eq.f32.partialorder %v650, 8.507059e+37
    %v652 = vand.u32 %v640, 2147483648
    %v653 = vor.u32 1.1754944e-38, %v652
    %v654 = vsel %vm651, %v653, %v649
    %v655 = vmul.f32 1.0, %v654
    %v656 = vtanh.pop %v636
    %v658 = vrot.slane %v524, 4
    %v660 = vmul.f32 %v655, %v658
    %662 = vrot.lane.b32.xlu0 %v656, 64
    %v663 = vpop.permute.xlu0 %662
    %v665 = vmul.f32 %v655, %v663
    %667 = vrot.lane.b32.xlu0 %v665, 32
    %v668 = vpop.permute.xlu0 %667
    %v670 = vadd.f32 %v660, %v668
    %v671 = vtanh.pop %v670
    %673 = vrot.lane.b32.xlu0 %v671, 64
    %v674 = vpop.permute.xlu0 %673
    %v676 = vmul.f32 %v655, %v674
    %678 = vrot.lane.b32.xlu0 %v676, 64
    %v679 = vpop.permute.xlu0 %678
    %s681 = scalar_lea.vmem [#allocation6], 16
    %682 = vst.msk [vmem:[%s681] sm:$0xf] %vm387, %v679
    %v683 = vld [vmem:[#allocation2 + $0x20] sm:$0xf]
    %v684 = vrot.slane %v603, 4
    %685 = vrot.lane.b32.xlu0 %v684, 32
    %v686 = vpop.permute.xlu0 %685
    %v687 = vsel %vm104, %v686, 0
    %689 = vmatpush.msra.mxu0 0.0
    %690 = vmatpush.msra.mxu0 0.0
    %691 = vmatpush.msra.mxu0 0.0
    %692 = vmatpush.msra.mxu0 0.0
    %693 = vmatpush.msra.mxu0 0.0
    %694 = vmatpush.msra.mxu0 0.0
    %695 = vmatpush.msra.mxu0 0.0
    %696 = vmatpush.msra.mxu0 0.0
    %697 = vmatpush.msra.mxu0 0.0
    %698 = vmatpush.msra.mxu0 0.0
    %699 = vmatpush.msra.mxu0 0.0
    %700 = vmatpush.msra.mxu0 0.0
    %701 = vmatpush.msra.mxu0 %v97
    %702 = vmatpush.msra.mxu0 %v96
    %703 = vmatpush.msra.mxu0 %v95
    %704 = vmatpush.msra.mxu0 %v94
    %705 = vmatmul.f32.gmra.mxu0 %v687
    %v706 = vpop.f32.mrf.mxu0
    %v707 = vadd.f32 0.0, %v706
    %708 = vdwg.mxu0
    %v709 = vadd.f32 %v683, %v707
    %v710 = vxor.u32 %v709, 2147483648
    %v711 = vmul.f32 %v710, 1.442695
    %v712 = vpow.pop %v711
    %v713 = vadd.f32 %v712, 1.0
    %v714 = vrcp.pop %v713
    %v715 = vmul.f32 %v713, %v714
    %v716 = vsub.f32 1.0, %v715
    %v717 = vmul.f32 %v714, %v716
    %v718 = vadd.f32 %v714, %v717
    %vm719 = vweird.f32 %v713
    %vm720 = vweird.f32 %v714
    %vm721 = vmor %vm719, %vm720
    %v722 = vsel %vm721, %v714, %v718
    %v723 = vand.u32 2147483647, %v713
    %vm724 = vcmp.eq.f32.partialorder %v723, 8.507059e+37
    %v725 = vand.u32 %v713, 2147483648
    %v726 = vor.u32 1.1754944e-38, %v725
    %v727 = vsel %vm724, %v726, %v722
    %v728 = vmul.f32 1.0, %v727
    %v729 = vtanh.pop %v709
    %v731 = vrot.slane %v597, 4
    %v733 = vmul.f32 %v728, %v731
    %735 = vrot.lane.b32.xlu0 %v729, 64
    %v736 = vpop.permute.xlu0 %735
    %v738 = vmul.f32 %v728, %v736
    %740 = vrot.lane.b32.xlu0 %v738, 32
    %v741 = vpop.permute.xlu0 %740
    %v743 = vadd.f32 %v733, %v741
    %v744 = vtanh.pop %v743
    %746 = vrot.lane.b32.xlu0 %v744, 64
    %v747 = vpop.permute.xlu0 %746
    %v749 = vmul.f32 %v728, %v747
    %751 = vrot.lane.b32.xlu0 %v749, 32
    %v752 = vpop.permute.xlu0 %751
    %754 = vst.msk [vmem:[%s681] sm:$0xf] %vm170, %v752
    %v755 = vld [vmem:[#allocation2 + $0x18] sm:$0xf0]
    %756 = vrot.lane.b32.xlu0 %v676, 32
    %v757 = vpop.permute.xlu0 %756
    %v758 = vsel %vm104, %v757, 0
    %760 = vmatpush.msra.mxu0 0.0
    %761 = vmatpush.msra.mxu0 0.0
    %762 = vmatpush.msra.mxu0 0.0
    %763 = vmatpush.msra.mxu0 0.0
    %764 = vmatpush.msra.mxu0 0.0
    %765 = vmatpush.msra.mxu0 0.0
    %766 = vmatpush.msra.mxu0 0.0
    %767 = vmatpush.msra.mxu0 0.0
    %768 = vmatpush.msra.mxu0 0.0
    %769 = vmatpush.msra.mxu0 0.0
    %770 = vmatpush.msra.mxu0 0.0
    %771 = vmatpush.msra.mxu0 0.0
    %772 = vmatpush.msra.mxu0 %v102
    %773 = vmatpush.msra.mxu0 %v101
    %774 = vmatpush.msra.mxu0 %v100
    %775 = vmatpush.msra.mxu0 %v99
    %776 = vmatmul.f32.gmra.mxu0 %v758
    %v777 = vpop.f32.mrf.mxu0
    %v778 = vadd.f32 0.0, %v777
    %779 = vdwg.mxu0
    %v781 = vrot.slane %v778, 4
    %v783 = vadd.f32 %v755, %v781
    %v784 = vxor.u32 %v783, 2147483648
    %v785 = vmul.f32 %v784, 1.442695
    %v786 = vpow.pop %v785
    %v787 = vadd.f32 %v786, 1.0
    %v788 = vrcp.pop %v787
    %v789 = vmul.f32 %v787, %v788
    %v790 = vsub.f32 1.0, %v789
    %v791 = vmul.f32 %v788, %v790
    %v792 = vadd.f32 %v788, %v791
    %vm793 = vweird.f32 %v787
    %vm794 = vweird.f32 %v788
    %vm795 = vmor %vm793, %vm794
    %v796 = vsel %vm795, %v788, %v792
    %v797 = vand.u32 2147483647, %v787
    %vm798 = vcmp.eq.f32.partialorder %v797, 8.507059e+37
    %v799 = vand.u32 %v787, 2147483648
    %v800 = vor.u32 1.1754944e-38, %v799
    %v801 = vsel %vm798, %v800, %v796
    %v802 = vmul.f32 1.0, %v801
    %v803 = vtanh.pop %v783
    %v805 = vrot.slane %v670, 4
    %v807 = vmul.f32 %v802, %v805
    %809 = vrot.lane.b32.xlu0 %v803, 64
    %v810 = vpop.permute.xlu0 %809
    %v812 = vmul.f32 %v802, %v810
    %814 = vrot.lane.b32.xlu0 %v812, 32
    %v815 = vpop.permute.xlu0 %814
    %v817 = vadd.f32 %v807, %v815
    %v818 = vtanh.pop %v817
    %820 = vrot.lane.b32.xlu0 %v818, 64
    %v821 = vpop.permute.xlu0 %820
    %v823 = vmul.f32 %v802, %v821
    %825 = vrot.lane.b32.xlu0 %v823, 64
    %v826 = vpop.permute.xlu0 %825
    %828 = vst.msk [vmem:[%s608 - $0x4] sm:$0xf0] %vm239, %v826
    %v829 = vld [vmem:[#allocation2 + $0x20] sm:$0xf0]
    %v830 = vsel %vm104, %v752, 0
    %832 = vmatpush.msra.mxu0 0.0
    %833 = vmatpush.msra.mxu0 0.0
    %834 = vmatpush.msra.mxu0 0.0
    %835 = vmatpush.msra.mxu0 0.0
    %836 = vmatpush.msra.mxu0 0.0
    %837 = vmatpush.msra.mxu0 0.0
    %838 = vmatpush.msra.mxu0 0.0
    %839 = vmatpush.msra.mxu0 0.0
    %840 = vmatpush.msra.mxu0 0.0
    %841 = vmatpush.msra.mxu0 0.0
    %842 = vmatpush.msra.mxu0 0.0
    %843 = vmatpush.msra.mxu0 0.0
    %844 = vmatpush.msra.mxu0 %v97
    %845 = vmatpush.msra.mxu0 %v96
    %846 = vmatpush.msra.mxu0 %v95
    %847 = vmatpush.msra.mxu0 %v94
    %848 = vmatmul.f32.gmra.mxu0 %v830
    %v849 = vpop.f32.mrf.mxu0
    %v850 = vadd.f32 0.0, %v849
    %851 = vdwg.mxu0
    %v853 = vrot.slane %v850, 4
    %v855 = vadd.f32 %v829, %v853
    %v856 = vxor.u32 %v855, 2147483648
    %v857 = vmul.f32 %v856, 1.442695
    %v858 = vpow.pop %v857
    %v859 = vadd.f32 %v858, 1.0
    %v860 = vrcp.pop %v859
    %v861 = vmul.f32 %v859, %v860
    %v862 = vsub.f32 1.0, %v861
    %v863 = vmul.f32 %v860, %v862
    %v864 = vadd.f32 %v860, %v863
    %vm865 = vweird.f32 %v859
    %vm866 = vweird.f32 %v860
    %vm867 = vmor %vm865, %vm866
    %v868 = vsel %vm867, %v860, %v864
    %v869 = vand.u32 2147483647, %v859
    %vm870 = vcmp.eq.f32.partialorder %v869, 8.507059e+37
    %v871 = vand.u32 %v859, 2147483648
    %v872 = vor.u32 1.1754944e-38, %v871
    %v873 = vsel %vm870, %v872, %v868
    %v874 = vmul.f32 1.0, %v873
    %v875 = vtanh.pop %v855
    %v877 = vrot.slane %v743, 4
    %v879 = vmul.f32 %v874, %v877
    %881 = vrot.lane.b32.xlu0 %v875, 64
    %v882 = vpop.permute.xlu0 %881
    %v884 = vmul.f32 %v874, %v882
    %886 = vrot.lane.b32.xlu0 %v884, 32
    %v887 = vpop.permute.xlu0 %886
    %v889 = vadd.f32 %v879, %v887
    %v890 = vtanh.pop %v889
    %892 = vrot.lane.b32.xlu0 %v890, 64
    %v893 = vpop.permute.xlu0 %892
    %v895 = vmul.f32 %v874, %v893
    %897 = vrot.lane.b32.xlu0 %v895, 32
    %v898 = vpop.permute.xlu0 %897
    %900 = vst.msk [vmem:[%s535 - $0x4] sm:$0xf0] %vm313, %v898
    %v901 = vld [vmem:[#allocation2 + $0x18] sm:$0xf]
    %v902 = vrot.slane %v823, 4
    %903 = vrot.lane.b32.xlu0 %v902, 32
    %v904 = vpop.permute.xlu0 %903
    %v905 = vsel %vm104, %v904, 0
    %907 = vmatpush.msra.mxu0 0.0
    %908 = vmatpush.msra.mxu0 0.0
    %909 = vmatpush.msra.mxu0 0.0
    %910 = vmatpush.msra.mxu0 0.0
    %911 = vmatpush.msra.mxu0 0.0
    %912 = vmatpush.msra.mxu0 0.0
    %913 = vmatpush.msra.mxu0 0.0
    %914 = vmatpush.msra.mxu0 0.0
    %915 = vmatpush.msra.mxu0 0.0
    %916 = vmatpush.msra.mxu0 0.0
    %917 = vmatpush.msra.mxu0 0.0
    %918 = vmatpush.msra.mxu0 0.0
    %919 = vmatpush.msra.mxu0 %v102
    %920 = vmatpush.msra.mxu0 %v101
    %921 = vmatpush.msra.mxu0 %v100
    %922 = vmatpush.msra.mxu0 %v99
    %923 = vmatmul.f32.gmra.mxu0 %v905
    %v924 = vpop.f32.mrf.mxu0
    %v925 = vadd.f32 0.0, %v924
    %926 = vdwg.mxu0
    %v927 = vadd.f32 %v901, %v925
    %v928 = vxor.u32 %v927, 2147483648
    %v929 = vmul.f32 %v928, 1.442695
    %v930 = vpow.pop %v929
    %v931 = vadd.f32 %v930, 1.0
    %v932 = vrcp.pop %v931
    %v933 = vmul.f32 %v931, %v932
    %v934 = vsub.f32 1.0, %v933
    %v935 = vmul.f32 %v932, %v934
    %v936 = vadd.f32 %v932, %v935
    %vm937 = vweird.f32 %v931
    %vm938 = vweird.f32 %v932
    %vm939 = vmor %vm937, %vm938
    %v940 = vsel %vm939, %v932, %v936
    %v941 = vand.u32 2147483647, %v931
    %vm942 = vcmp.eq.f32.partialorder %v941, 8.507059e+37
    %v943 = vand.u32 %v931, 2147483648
    %v944 = vor.u32 1.1754944e-38, %v943
    %v945 = vsel %vm942, %v944, %v940
    %v946 = vmul.f32 1.0, %v945
    %v947 = vtanh.pop %v927
    %v949 = vrot.slane %v817, 4
    %v951 = vmul.f32 %v946, %v949
    %953 = vrot.lane.b32.xlu0 %v947, 64
    %v954 = vpop.permute.xlu0 %953
    %v956 = vmul.f32 %v946, %v954
    %958 = vrot.lane.b32.xlu0 %v956, 32
    %v959 = vpop.permute.xlu0 %958
    %v961 = vadd.f32 %v951, %v959
    %v962 = vtanh.pop %v961
    %964 = vrot.lane.b32.xlu0 %v962, 64
    %v965 = vpop.permute.xlu0 %964
    %v967 = vmul.f32 %v946, %v965
    %969 = vrot.lane.b32.xlu0 %v967, 64
    %v970 = vpop.permute.xlu0 %969
    %972 = vst.msk [vmem:[%s460] sm:$0xf] %vm387, %v970
    %v973 = vld [vmem:[#allocation2 + $0x30] sm:$0xf]
    %v974 = vrot.slane %v895, 4
    %975 = vrot.lane.b32.xlu0 %v974, 32
    %v976 = vpop.permute.xlu0 %975
    %v977 = vsel %vm104, %v976, 0
    %979 = vmatpush.msra.mxu0 0.0
    %980 = vmatpush.msra.mxu0 0.0
    %981 = vmatpush.msra.mxu0 0.0
    %982 = vmatpush.msra.mxu0 0.0
    %983 = vmatpush.msra.mxu0 0.0
    %984 = vmatpush.msra.mxu0 0.0
    %985 = vmatpush.msra.mxu0 0.0
    %986 = vmatpush.msra.mxu0 0.0
    %987 = vmatpush.msra.mxu0 0.0
    %988 = vmatpush.msra.mxu0 0.0
    %989 = vmatpush.msra.mxu0 0.0
    %990 = vmatpush.msra.mxu0 0.0
    %991 = vmatpush.msra.mxu0 %v97
    %992 = vmatpush.msra.mxu0 %v96
    %993 = vmatpush.msra.mxu0 %v95
    %994 = vmatpush.msra.mxu0 %v94
    %995 = vmatmul.f32.gmra.mxu0 %v977
    %v996 = vpop.f32.mrf.mxu0
    %v997 = vadd.f32 0.0, %v996
    %998 = vdwg.mxu0
    %v999 = vadd.f32 %v973, %v997
    %v1000 = vxor.u32 %v999, 2147483648
    %v1001 = vmul.f32 %v1000, 1.442695
    %v1002 = vpow.pop %v1001
    %v1003 = vadd.f32 %v1002, 1.0
    %v1004 = vrcp.pop %v1003
    %v1005 = vmul.f32 %v1003, %v1004
    %v1006 = vsub.f32 1.0, %v1005
    %v1007 = vmul.f32 %v1004, %v1006
    %v1008 = vadd.f32 %v1004, %v1007
    %vm1009 = vweird.f32 %v1003
    %vm1010 = vweird.f32 %v1004
    %vm1011 = vmor %vm1009, %vm1010
    %v1012 = vsel %vm1011, %v1004, %v1008
    %v1013 = vand.u32 2147483647, %v1003
    %vm1014 = vcmp.eq.f32.partialorder %v1013, 8.507059e+37
    %v1015 = vand.u32 %v1003, 2147483648
    %v1016 = vor.u32 1.1754944e-38, %v1015
    %v1017 = vsel %vm1014, %v1016, %v1012
    %v1018 = vmul.f32 1.0, %v1017
    %v1019 = vtanh.pop %v999
    %v1021 = vrot.slane %v889, 4
    %v1023 = vmul.f32 %v1018, %v1021
    %1025 = vrot.lane.b32.xlu0 %v1019, 64
    %v1026 = vpop.permute.xlu0 %1025
    %v1028 = vmul.f32 %v1018, %v1026
    %1030 = vrot.lane.b32.xlu0 %v1028, 32
    %v1031 = vpop.permute.xlu0 %1030
    %v1033 = vadd.f32 %v1023, %v1031
    %v1034 = vtanh.pop %v1033
    %1036 = vrot.lane.b32.xlu0 %v1034, 64
    %v1037 = vpop.permute.xlu0 %1036
    %v1039 = vmul.f32 %v1018, %v1037
    %1041 = vrot.lane.b32.xlu0 %v1039, 32
    %v1042 = vpop.permute.xlu0 %1041
    %1044 = vst.msk [vmem:[%s386] sm:$0xf] %vm170, %v1042
    %v1045 = vld [vmem:[#allocation2 + $0x8] sm:$0xf0]
    %1046 = vrot.lane.b32.xlu0 %v967, 32
    %v1047 = vpop.permute.xlu0 %1046
    %v1048 = vsel %vm104, %v1047, 0
    %1050 = vmatpush.msra.mxu0 0.0
    %1051 = vmatpush.msra.mxu0 0.0
    %1052 = vmatpush.msra.mxu0 0.0
    %1053 = vmatpush.msra.mxu0 0.0
    %1054 = vmatpush.msra.mxu0 0.0
    %1055 = vmatpush.msra.mxu0 0.0
    %1056 = vmatpush.msra.mxu0 0.0
    %1057 = vmatpush.msra.mxu0 0.0
    %1058 = vmatpush.msra.mxu0 0.0
    %1059 = vmatpush.msra.mxu0 0.0
    %1060 = vmatpush.msra.mxu0 0.0
    %1061 = vmatpush.msra.mxu0 0.0
    %1062 = vmatpush.msra.mxu0 %v102
    %1063 = vmatpush.msra.mxu0 %v101
    %1064 = vmatpush.msra.mxu0 %v100
    %1065 = vmatpush.msra.mxu0 %v99
    %1066 = vmatmul.f32.gmra.mxu0 %v1048
    %v1067 = vpop.f32.mrf.mxu0
    %v1068 = vadd.f32 0.0, %v1067
    %1069 = vdwg.mxu0
    %v1071 = vrot.slane %v1068, 4
    %v1073 = vadd.f32 %v1045, %v1071
    %v1074 = vxor.u32 %v1073, 2147483648
    %v1075 = vmul.f32 %v1074, 1.442695
    %v1076 = vpow.pop %v1075
    %v1077 = vadd.f32 %v1076, 1.0
    %v1078 = vrcp.pop %v1077
    %v1079 = vmul.f32 %v1077, %v1078
    %v1080 = vsub.f32 1.0, %v1079
    %v1081 = vmul.f32 %v1078, %v1080
    %v1082 = vadd.f32 %v1078, %v1081
    %vm1083 = vweird.f32 %v1077
    %vm1084 = vweird.f32 %v1078
    %vm1085 = vmor %vm1083, %vm1084
    %v1086 = vsel %vm1085, %v1078, %v1082
    %v1087 = vand.u32 2147483647, %v1077
    %vm1088 = vcmp.eq.f32.partialorder %v1087, 8.507059e+37
    %v1089 = vand.u32 %v1077, 2147483648
    %v1090 = vor.u32 1.1754944e-38, %v1089
    %v1091 = vsel %vm1088, %v1090, %v1086
    %v1092 = vmul.f32 1.0, %v1091
    %v1093 = vtanh.pop %v1073
    %v1095 = vrot.slane %v961, 4
    %v1097 = vmul.f32 %v1092, %v1095
    %1099 = vrot.lane.b32.xlu0 %v1093, 64
    %v1100 = vpop.permute.xlu0 %1099
    %v1102 = vmul.f32 %v1092, %v1100
    %1104 = vrot.lane.b32.xlu0 %v1102, 32
    %v1105 = vpop.permute.xlu0 %1104
    %v1107 = vadd.f32 %v1097, %v1105
    %v1108 = vtanh.pop %v1107
    %1110 = vrot.lane.b32.xlu0 %v1108, 64
    %v1111 = vpop.permute.xlu0 %1110
    %v1113 = vmul.f32 %v1092, %v1111
    %1115 = vrot.lane.b32.xlu0 %v1113, 64
    %v1116 = vpop.permute.xlu0 %1115
    %1118 = vst.msk [vmem:[%s312 - $0x4] sm:$0xf0] %vm239, %v1116
    %v1119 = vld [vmem:[#allocation2 + $0x30] sm:$0xf0]
    %v1120 = vsel %vm104, %v1042, 0
    %1122 = vmatpush.msra.mxu0 0.0
    %1123 = vmatpush.msra.mxu0 0.0
    %1124 = vmatpush.msra.mxu0 0.0
    %1125 = vmatpush.msra.mxu0 0.0
    %1126 = vmatpush.msra.mxu0 0.0
    %1127 = vmatpush.msra.mxu0 0.0
    %1128 = vmatpush.msra.mxu0 0.0
    %1129 = vmatpush.msra.mxu0 0.0
    %1130 = vmatpush.msra.mxu0 0.0
    %1131 = vmatpush.msra.mxu0 0.0
    %1132 = vmatpush.msra.mxu0 0.0
    %1133 = vmatpush.msra.mxu0 0.0
    %1134 = vmatpush.msra.mxu0 %v97
    %1135 = vmatpush.msra.mxu0 %v96
    %1136 = vmatpush.msra.mxu0 %v95
    %1137 = vmatpush.msra.mxu0 %v94
    %1138 = vmatmul.f32.gmra.mxu0 %v1120
    %v1139 = vpop.f32.mrf.mxu0
    %v1140 = vadd.f32 0.0, %v1139
    %1141 = vdwg.mxu0
    %v1143 = vrot.slane %v1140, 4
    %v1145 = vadd.f32 %v1119, %v1143
    %v1146 = vxor.u32 %v1145, 2147483648
    %v1147 = vmul.f32 %v1146, 1.442695
    %v1148 = vpow.pop %v1147
    %v1149 = vadd.f32 %v1148, 1.0
    %v1150 = vrcp.pop %v1149
    %v1151 = vmul.f32 %v1149, %v1150
    %v1152 = vsub.f32 1.0, %v1151
    %v1153 = vmul.f32 %v1150, %v1152
    %v1154 = vadd.f32 %v1150, %v1153
    %vm1155 = vweird.f32 %v1149
    %vm1156 = vweird.f32 %v1150
    %vm1157 = vmor %vm1155, %vm1156
    %v1158 = vsel %vm1157, %v1150, %v1154
    %v1159 = vand.u32 2147483647, %v1149
    %vm1160 = vcmp.eq.f32.partialorder %v1159, 8.507059e+37
    %v1161 = vand.u32 %v1149, 2147483648
    %v1162 = vor.u32 1.1754944e-38, %v1161
    %v1163 = vsel %vm1160, %v1162, %v1158
    %v1164 = vmul.f32 1.0, %v1163
    %v1165 = vtanh.pop %v1145
    %v1167 = vrot.slane %v1033, 4
    %v1169 = vmul.f32 %v1164, %v1167
    %1171 = vrot.lane.b32.xlu0 %v1165, 64
    %v1172 = vpop.permute.xlu0 %1171
    %v1174 = vmul.f32 %v1164, %v1172
    %1176 = vrot.lane.b32.xlu0 %v1174, 32
    %v1177 = vpop.permute.xlu0 %1176
    %v1179 = vadd.f32 %v1169, %v1177
    %v1180 = vtanh.pop %v1179
    %1182 = vrot.lane.b32.xlu0 %v1180, 64
    %v1183 = vpop.permute.xlu0 %1182
    %v1185 = vmul.f32 %v1164, %v1183
    %1187 = vrot.lane.b32.xlu0 %v1185, 32
    %v1188 = vpop.permute.xlu0 %1187
    %1190 = vst.msk [vmem:[%s238 - $0x4] sm:$0xf0] %vm313, %v1188
    %v1191 = vld [vmem:[#allocation2 + $0x8] sm:$0xf]
    %v1192 = vrot.slane %v1113, 4
    %1193 = vrot.lane.b32.xlu0 %v1192, 32
    %v1194 = vpop.permute.xlu0 %1193
    %v1195 = vsel %vm104, %v1194, 0
    %1197 = vmatpush.msra.mxu0 0.0
    %1198 = vmatpush.msra.mxu0 0.0
    %1199 = vmatpush.msra.mxu0 0.0
    %1200 = vmatpush.msra.mxu0 0.0
    %1201 = vmatpush.msra.mxu0 0.0
    %1202 = vmatpush.msra.mxu0 0.0
    %1203 = vmatpush.msra.mxu0 0.0
    %1204 = vmatpush.msra.mxu0 0.0
    %1205 = vmatpush.msra.mxu0 0.0
    %1206 = vmatpush.msra.mxu0 0.0
    %1207 = vmatpush.msra.mxu0 0.0
    %1208 = vmatpush.msra.mxu0 0.0
    %1209 = vmatpush.msra.mxu0 %v102
    %1210 = vmatpush.msra.mxu0 %v101
    %1211 = vmatpush.msra.mxu0 %v100
    %1212 = vmatpush.msra.mxu0 %v99
    %1213 = vmatmul.f32.gmra.mxu0 %v1195
    %v1214 = vpop.f32.mrf.mxu0
    %v1215 = vadd.f32 0.0, %v1214
    %1216 = vdwg.mxu0
    %v1217 = vadd.f32 %v1191, %v1215
    %v1218 = vxor.u32 %v1217, 2147483648
    %v1219 = vmul.f32 %v1218, 1.442695
    %v1220 = vpow.pop %v1219
    %v1221 = vadd.f32 %v1220, 1.0
    %v1222 = vrcp.pop %v1221
    %v1223 = vmul.f32 %v1221, %v1222
    %v1224 = vsub.f32 1.0, %v1223
    %v1225 = vmul.f32 %v1222, %v1224
    %v1226 = vadd.f32 %v1222, %v1225
    %vm1227 = vweird.f32 %v1221
    %vm1228 = vweird.f32 %v1222
    %vm1229 = vmor %vm1227, %vm1228
    %v1230 = vsel %vm1229, %v1222, %v1226
    %v1231 = vand.u32 2147483647, %v1221
    %vm1232 = vcmp.eq.f32.partialorder %v1231, 8.507059e+37
    %v1233 = vand.u32 %v1221, 2147483648
    %v1234 = vor.u32 1.1754944e-38, %v1233
    %v1235 = vsel %vm1232, %v1234, %v1230
    %v1236 = vmul.f32 1.0, %v1235
    %v1237 = vtanh.pop %v1217
    %v1239 = vrot.slane %v1107, 4
    %v1241 = vmul.f32 %v1236, %v1239
    %1243 = vrot.lane.b32.xlu0 %v1237, 64
    %v1244 = vpop.permute.xlu0 %1243
    %v1246 = vmul.f32 %v1236, %v1244
    %1248 = vrot.lane.b32.xlu0 %v1246, 32
    %v1249 = vpop.permute.xlu0 %1248
    %v1251 = vadd.f32 %v1241, %v1249
    %v1252 = vtanh.pop %v1251
    %1254 = vrot.lane.b32.xlu0 %v1252, 64
    %v1255 = vpop.permute.xlu0 %1254
    %v1257 = vmul.f32 %v1236, %v1255
    %1259 = vrot.lane.b32.xlu0 %v1257, 64
    %v1260 = vpop.permute.xlu0 %1259
    %1262 = vst.msk [vmem:[#allocation6] sm:$0xf] %vm387, %v1260
    // Predicated region
    $region22: #{tpu_custom_call.1} parent=1 // pred_check
      _
    $region23: #{tpu_custom_call.1} parent=1 // pred_check_branch
      %1264 = sbr.rel (0) target = $region25
    $region24: #{tpu_custom_call.1} parent=1 // pred_region
      %1266 = vsyncadd [#allocation5], 0
      %s1267 = sshll.u32 [#allocation6], 4
      %s1268 = int_to_ptr.vmem [resolvable:$true] %s1267
      %s1269 = sshll.u32 %s4, 4
      %s1270 = int_to_ptr.hbm [resolvable:$true] %s1269
      %1275 = dma.vmem_to_hbm [thread:$0]  %s1268, 512, %s1270, [#allocation5], 64, 64, 4
    $region25: #{tpu_custom_call.1} parent=1 // pred_fallthru
      _
    // Predicated region
    $region26: #{tpu_custom_call.1} parent=1 // pred_check
      _
    $region27: #{tpu_custom_call.1} parent=1 // pred_check_branch
      %1277 = sbr.rel (0) target = $region29
    $region28: #{tpu_custom_call.1} parent=1 // pred_region
      %1279 = dma.done [#allocation5], 512
    $region29: #{tpu_custom_call.1} parent=1 // pred_fallthru
      _
    %1280 = vsyncpa [#allocation4], 1
    %1281 = vsyncpa [#allocation5], 1

</llo_original>
